<compile_context>
chip_gen: v6e
topology: v6e:2x2x1
jax: 0.10.0
libtpu: 0.0.40
codegen_flags: <defaults>
</compile_context>

<pallas_src>
import functools

import jax
import jax.numpy as jnp
from jax.experimental import pallas as pl
from jax.experimental.pallas import tpu as pltpu


def _lane_roll(x, shift):
    """Circular shift along the last axis: out[..., l] = x[..., (l + shift) % n].

    Static lane slices + concat; lowers to the same XLU lane rotates as
    pltpu.roll but uses only bread-and-butter ops.
    """
    return jnp.concatenate([x[..., shift:], x[..., :shift]], axis=-1)


def _packed_kernel(x_ref, w_ref, b_ref, s_ref, o_ref, *, nbins, pack):
    """One batch tile of the fused classifier+regressor.

    x_ref: (tile_p, pack*F)        `pack` original rows per packed row
    w_ref: (pack*F, 2*nbins*pack)  block-diagonal fused [Wc^T | Wr^T], bin-major cols
    b_ref: (1, 2*nbins*pack)       fused biases (same column order)
    s_ref: (nbins*pack, pack)      0/1 group-sum matrix (bin sums on the MXU)
    o_ref: (tile_p, pack)          column q = result for original row i*pack + q
    """
    half = nbins * pack
    hi = jax.lax.Precision.HIGHEST

    # One fused MXU matmul for both Linear layers of all packed rows.
    y = jnp.dot(x_ref[...], w_ref[...],
                preferred_element_type=jnp.float32, precision=hi)
    y = y + b_ref[...]
    logits = y[:, :half]          # lane j*pack + q  ->  bin j of packed slot q
    reg = y[:, half:]

    # Numerically stable softmax: exact per-slot max over bins.  Lane strides
    # of `pack` always stay inside one packed slot, so ceil(log2(nbins))
    # doubling rolls leave every lane holding its slot's max (XLU work only).
    m = logits
    shift = pack
    for _ in range((nbins - 1).bit_length()):
        m = jnp.maximum(m, _lane_roll(m, shift))
        shift *= 2
    e = jnp.exp(logits - m)       # unnormalised softmax weights

    # Bin sums on the MXU instead of XLU lane reductions:
    #   num[:, q] = sum_j e[:, j*pack+q] * reg[:, j*pack+q]
    #   den[:, q] = sum_j e[:, j*pack+q]
    num = jnp.dot(e * reg, s_ref[...],
                  preferred_element_type=jnp.float32, precision=hi)
    den = jnp.dot(e, s_ref[...],
                  preferred_element_type=jnp.float32, precision=hi)
    # den >= 1 (the max bin contributes exp(0)); exact divide, no approx recip.
    o_ref[...] = (num / den).astype(o_ref.dtype)


def separate_region_regressor_forward(x, wc, bc, wr, br, *,
                                      tile_rows=32768,
                                      vmem_limit_bytes=None):
    """Forward pass of SeparateRegionRegressor.

    x      : (N, F)  float32 or bfloat16 (bf16 halves HBM traffic; no cast here)
    wc, wr : (B, F)  PyTorch nn.Linear weight layout (out_features, in_features)
    bc, br : (B,)    biases
    returns: (N, 1)  float32
    """
    N, F = x.shape
    B, Fw = wc.shape
    assert Fw == F and wr.shape == (B, F) and bc.shape == (B,) and br.shape == (B,)

    # Pack P rows per packed row so the feature axis fills the 128-wide lanes.
    P = 128 // F if (F <= 128 and 128 % F == 0) else 1

    # Only copy x if N is not a multiple of the packing factor (<= P-1 pad
    # rows, sliced off below).  No padding to a tile multiple: the grid uses
    # cdiv and Pallas clamps the edge block.
    n_eff = N
    if N % P != 0:
        pad = P - N % P
        x = jnp.pad(x, ((0, pad), (0, 0)))
        n_eff = N + pad
    n_p = n_eff // P
    xp = x.reshape(n_p, P * F)        # row-major => free reshape

    f32 = jnp.float32
    eye_p = jnp.eye(P, dtype=f32)
    # Block-diagonal fused weight: W[p*F+f, j*P+q] = wc[j, f] * (p == q) for the
    # classifier half (same with wr for the regression half).  Bin-major column
    # order keeps packed slot q on lanes q, q+P, q+2P, ...
    w_cls = jnp.einsum("jf,pq->pfjq", wc.astype(f32), eye_p).reshape(P * F, B * P)
    w_reg = jnp.einsum("jf,pq->pfjq", wr.astype(f32), eye_p).reshape(P * F, B * P)
    w_big = jnp.concatenate([w_cls, w_reg], axis=1).astype(x.dtype)  # (P*F, 2*B*P)
    b_big = jnp.concatenate([jnp.repeat(bc.astype(f32), P),
                             jnp.repeat(br.astype(f32), P)]).reshape(1, 2 * B * P)
    s_sum = jnp.tile(eye_p, (B, 1))                                  # (B*P, P)

    # Packed rows per grid step: a multiple of 8 sublanes, or the full extent.
    tile_p = min(n_p, max(8, ((tile_rows // P) // 8) * 8))
    grid = (pl.cdiv(n_p, tile_p),)

    cp = dict(dimension_semantics=("parallel",))
    if vmem_limit_bytes is not None:
        cp["vmem_limit_bytes"] = vmem_limit_bytes

    out = pl.pallas_call(
        functools.partial(_packed_kernel, nbins=B, pack=P),
        out_shape=jax.ShapeDtypeStruct((n_p, P), jnp.float32),
        grid_spec=pltpu.PrefetchScalarGridSpec(
            num_scalar_prefetch=0,
            grid=grid,
            in_specs=[
                pl.BlockSpec((tile_p, P * F), lambda i: (i, 0)),
                # Constant block index: weights / bias / sum-matrix fetched once.
                pl.BlockSpec((P * F, 2 * B * P), lambda i: (0, 0)),
                pl.BlockSpec((1, 2 * B * P), lambda i: (0, 0)),
                pl.BlockSpec((B * P, P), lambda i: (0, 0)),
            ],
            out_specs=pl.BlockSpec((tile_p, P), lambda i: (i, 0)),
        ),
        compiler_params=pltpu.CompilerParams(**cp),
    )(xp, w_big, b_big, s_sum)

    # (n_p, P) -> (n_eff, 1) is a free row-major reshape; drop the pad rows.
    return out.reshape(n_eff, 1)[:N]


def _reference_forward(x, wc, bc, wr, br):
    hi = jax.lax.Precision.HIGHEST
    logits = jnp.dot(x, wc.T, precision=hi) + bc
    probs = jax.nn.softmax(logits, axis=1)
    reg = jnp.dot(x, wr.T, precision=hi) + br
    return jnp.sum(probs * reg, axis=1, keepdims=True)


if __name__ == "__main__":
    feature_size = 32
    separate_bins = 4

    key = jax.random.PRNGKey(0)
    kx1, kx2, kwc, kbc, kwr, kbr = jax.random.split(key, 6)

    # PyTorch nn.Linear default-init style parameters, in PyTorch layout.
    bound = 1.0 / (feature_size ** 0.5)
    wc = jax.random.uniform(kwc, (separate_bins, feature_size), jnp.float32, -bound, bound)
    bc = jax.random.uniform(kbc, (separate_bins,), jnp.float32, -bound, bound)
    wr = jax.random.uniform(kwr, (separate_bins, feature_size), jnp.float32, -bound, bound)
    br = jax.random.uniform(kbr, (separate_bins,), jnp.float32, -bound, bound)

    x_small = jax.random.normal(kx1, (16, feature_size), jnp.float32)
    x_multi = jax.random.normal(kx2, (333, feature_size), jnp.float32)  # ragged, multi-tile

    out_small = jax.block_until_ready(
        separate_region_regressor_forward(x_small, wc, bc, wr, br))
    # tile_rows=128 -> 3 grid steps, N % 4 != 0 (tiny pad-to-pack copy),
    # clamped last block (no tile-multiple padding of x).
    out_multi = jax.block_until_ready(
        separate_region_regressor_forward(x_multi, wc, bc, wr, br, tile_rows=128))

    ref_small = _reference_forward(x_small, wc, bc, wr, br)
    ref_multi = _reference_forward(x_multi, wc, bc, wr, br)

    assert out_small.shape == (16, 1), out_small.shape
    assert out_multi.shape == (333, 1), out_multi.shape
    # 5e-3 covers a worst-case single-pass-bf16 MXU f32 matmul in case the
    # HIGHEST-precision hint is not honoured by the lowering; results are O(1),
    # so this still catches any real layout / packing bug.
    assert jnp.allclose(out_small, ref_small, atol=5e-3, rtol=5e-3), (
        float(jnp.max(jnp.abs(out_small - ref_small))))
    assert jnp.allclose(out_multi, ref_multi, atol=5e-3, rtol=5e-3), (
        float(jnp.max(jnp.abs(out_multi - ref_multi))))

    print("KERNEL_OK")
</pallas_src>

<mosaic_0001>
module attributes {stable_mosaic.version = 11 : i64} {
  func.func @_packed_kernel(%arg0: i32, %arg1: memref<4x128xf32, #tpu.memory_space<vmem>>, %arg2: memref<128x32xf32, #tpu.memory_space<vmem>>, %arg3: memref<1x32xf32, #tpu.memory_space<vmem>>, %arg4: memref<16x4xf32, #tpu.memory_space<vmem>>, %arg5: memref<4x4xf32, #tpu.memory_space<vmem>>) attributes {dimension_semantics = [#tpu.dimension_semantics<parallel>], iteration_bounds = array<i64: 1>, scalar_prefetch = 0 : i64, scratch_operands = 0 : i64, tpu.core_type = #tpu.core_type<tc>, window_params = [{transform_indices = @transform_0, window_bounds = array<i64: 4, 128>}, {pipeline_mode = #tpu.pipeline_mode<synchronous>, transform_indices = @transform_1, window_bounds = array<i64: 128, 32>}, {pipeline_mode = #tpu.pipeline_mode<synchronous>, transform_indices = @transform_2, window_bounds = array<i64: 1, 32>}, {pipeline_mode = #tpu.pipeline_mode<synchronous>, transform_indices = @transform_3, window_bounds = array<i64: 16, 4>}, {transform_indices = @transform_4, window_bounds = array<i64: 4, 4>}]} {
    %c0 = arith.constant 0 : index
    %c0_0 = arith.constant 0 : index
    %0 = vector.load %arg1[%c0, %c0_0] : memref<4x128xf32, #tpu.memory_space<vmem>>, vector<4x128xf32>
    %c0_1 = arith.constant 0 : index
    %c0_2 = arith.constant 0 : index
    %1 = vector.load %arg2[%c0_1, %c0_2] : memref<128x32xf32, #tpu.memory_space<vmem>>, vector<128x32xf32>
    %cst = arith.constant dense<0.000000e+00> : vector<4x32xf32>
    %2 = tpu.matmul %0, %1, %cst {dimension_numbers = #tpu.dot_dimension_numbers<[1], [0], [0], [1], [0, 0, 1, 1], [], []>, precision = #tpu.contract_precision<fp32>} : vector<4x128xf32>, vector<128x32xf32>, vector<4x32xf32> -> vector<4x32xf32>
    %c0_3 = arith.constant 0 : index
    %c0_4 = arith.constant 0 : index
    %3 = vector.load %arg3[%c0_3, %c0_4] : memref<1x32xf32, #tpu.memory_space<vmem>>, vector<1x32xf32>
    %4 = vector.broadcast %3 : vector<1x32xf32> to vector<4x32xf32>
    %5 = arith.addf %2, %4 : vector<4x32xf32>
    %6 = vector.extract_strided_slice %5 {offsets = [0, 0], sizes = [4, 16], strides = [1, 1]} : vector<4x32xf32> to vector<4x16xf32>
    %7 = vector.extract_strided_slice %5 {offsets = [0, 16], sizes = [4, 16], strides = [1, 1]} : vector<4x32xf32> to vector<4x16xf32>
    %8 = vector.extract_strided_slice %6 {offsets = [0, 4], sizes = [4, 12], strides = [1, 1]} : vector<4x16xf32> to vector<4x12xf32>
    %9 = vector.extract_strided_slice %6 {offsets = [0, 0], sizes = [4, 4], strides = [1, 1]} : vector<4x16xf32> to vector<4x4xf32>
    %10 = tpu.concatenate %8, %9 in 1 : vector<4x12xf32>, vector<4x4xf32> -> vector<4x16xf32>
    %11 = arith.maximumf %6, %10 : vector<4x16xf32>
    %12 = vector.extract_strided_slice %11 {offsets = [0, 8], sizes = [4, 8], strides = [1, 1]} : vector<4x16xf32> to vector<4x8xf32>
    %13 = vector.extract_strided_slice %11 {offsets = [0, 0], sizes = [4, 8], strides = [1, 1]} : vector<4x16xf32> to vector<4x8xf32>
    %14 = tpu.concatenate %12, %13 in 1 : vector<4x8xf32>, vector<4x8xf32> -> vector<4x16xf32>
    %15 = arith.maximumf %11, %14 : vector<4x16xf32>
    %16 = arith.subf %6, %15 : vector<4x16xf32>
    %17 = math.exp %16 : vector<4x16xf32>
    %18 = arith.mulf %17, %7 : vector<4x16xf32>
    %c0_5 = arith.constant 0 : index
    %c0_6 = arith.constant 0 : index
    %19 = vector.load %arg4[%c0_5, %c0_6] : memref<16x4xf32, #tpu.memory_space<vmem>>, vector<16x4xf32>
    %cst_7 = arith.constant dense<0.000000e+00> : vector<4x4xf32>
    %20 = tpu.matmul %18, %19, %cst_7 {dimension_numbers = #tpu.dot_dimension_numbers<[1], [0], [0], [1], [0, 0, 1, 1], [], []>, precision = #tpu.contract_precision<fp32>} : vector<4x16xf32>, vector<16x4xf32>, vector<4x4xf32> -> vector<4x4xf32>
    %c0_8 = arith.constant 0 : index
    %c0_9 = arith.constant 0 : index
    %21 = vector.load %arg4[%c0_8, %c0_9] : memref<16x4xf32, #tpu.memory_space<vmem>>, vector<16x4xf32>
    %cst_10 = arith.constant dense<0.000000e+00> : vector<4x4xf32>
    %22 = tpu.matmul %17, %21, %cst_10 {dimension_numbers = #tpu.dot_dimension_numbers<[1], [0], [0], [1], [0, 0, 1, 1], [], []>, precision = #tpu.contract_precision<fp32>} : vector<4x16xf32>, vector<16x4xf32>, vector<4x4xf32> -> vector<4x4xf32>
    %23 = arith.divf %20, %22 : vector<4x4xf32>
    %c0_11 = arith.constant 0 : index
    %c0_12 = arith.constant 0 : index
    %24 = vector.load %arg5[%c0_11, %c0_12] : memref<4x4xf32, #tpu.memory_space<vmem>>, vector<4x4xf32>
    tpu.vector_store %arg5[%c0_11, %c0_12], %23 {strides = array<i32>} : memref<4x4xf32, #tpu.memory_space<vmem>>, vector<4x4xf32>,
    return
  }
  func.func @transform_0(%arg0: i32) -> (i32, i32) {
    %c0_i32 = arith.constant 0 : i32
    %c0_i32_0 = arith.constant 0 : i32
    return %arg0, %c0_i32 : i32, i32
  }
  func.func @transform_1(%arg0: i32) -> (i32, i32) {
    %c0_i32 = arith.constant 0 : i32
    %c0_i32_0 = arith.constant 0 : i32
    %c0_i32_1 = arith.constant 0 : i32
    return %c0_i32, %c0_i32_0 : i32, i32
  }
  func.func @transform_2(%arg0: i32) -> (i32, i32) {
    %c0_i32 = arith.constant 0 : i32
    %c0_i32_0 = arith.constant 0 : i32
    %c0_i32_1 = arith.constant 0 : i32
    return %c0_i32, %c0_i32_0 : i32, i32
  }
  func.func @transform_3(%arg0: i32) -> (i32, i32) {
    %c0_i32 = arith.constant 0 : i32
    %c0_i32_0 = arith.constant 0 : i32
    %c0_i32_1 = arith.constant 0 : i32
    return %c0_i32, %c0_i32_0 : i32, i32
  }
  func.func @transform_4(%arg0: i32) -> (i32, i32) {
    %c0_i32 = arith.constant 0 : i32
    %c0_i32_0 = arith.constant 0 : i32
    return %arg0, %c0_i32 : i32, i32
  }
}

</mosaic_0001>

<llo_original>
// kernel: tpu_custom_call.1
$region0: #{tpu_custom_call.1}
  #allocation0 [shape = 'u32[]', space=smem, size = 0x4, offset = 0x4, fixed_abs, tag = 'smem constant byte address 0x4 - core index']
  #allocation1 [shape = 'u32[144,128]{1,0:T(1,128)}', space=vmem, size = 0x12000, scoped, tag = 'internal scratch']
  %s0 = inlined_call_operand.vmem [shape: f32[4,128], index: 0, kind: input, shape index: {}]
  %s1 = inlined_call_operand.vmem [shape: f32[128,32], index: 1, kind: input, shape index: {}]
  %s2 = inlined_call_operand.vmem [shape: f32[1,32], index: 2, kind: input, shape index: {}]
  %s3 = inlined_call_operand.vmem [shape: f32[16,4], index: 3, kind: input, shape index: {}]
  %s4 = inlined_call_operand.hbm [shape: f32[4,4], index: 4, kind: output, shape index: {}]
  %s5 = sld [smem:[#allocation0]]
  $region26: #{tpu_custom_call.1} parent=0
    _
  %s7 = ssub.s32 1, %s5
  %s8 = scalar_select 0, %s7, %s5
  $region1: #{tpu_custom_call.1} parent=0
    #allocation2 [shape = 'u8[2048]{0}', space=vmem, size = 0x800, scoped, tag = 'output window, operand 0, single buffered']
    #allocation3 [shape = 's32[1]{0}', space=sflag, size = 0x4, scoped, tag = 'scoped memory for tpu_custom_call.1']
    %9 = vsyncpa [#allocation3], 0
    // Predicated region
    $region2: #{tpu_custom_call.1} parent=1 // pred_check
      _
    $region3: #{tpu_custom_call.1} parent=1 // pred_check_branch
      %11 = sbr.rel (0) target = $region5
    $region4: #{tpu_custom_call.1} parent=1 // pred_region
      _
    $region5: #{tpu_custom_call.1} parent=1 // pred_fallthru
      _
    // Predicated region
    $region6: #{tpu_custom_call.1} parent=1 // pred_check
      _
    $region7: #{tpu_custom_call.1} parent=1 // pred_check_branch
      %13 = sbr.rel (0) target = $region9
    $region8: #{tpu_custom_call.1} parent=1 // pred_region
      _
    $region9: #{tpu_custom_call.1} parent=1 // pred_fallthru
      _
    // Predicated region
    $region10: #{tpu_custom_call.1} parent=1 // pred_check
      _
    $region11: #{tpu_custom_call.1} parent=1 // pred_check_branch
      %15 = sbr.rel (0) target = $region13
    $region12: #{tpu_custom_call.1} parent=1 // pred_region
      _
    $region13: #{tpu_custom_call.1} parent=1 // pred_fallthru
      _
    // Predicated region
    $region14: #{tpu_custom_call.1} parent=1 // pred_check
      _
    $region15: #{tpu_custom_call.1} parent=1 // pred_check_branch
      %17 = sbr.rel (0) target = $region17
    $region16: #{tpu_custom_call.1} parent=1 // pred_region
      _
    $region17: #{tpu_custom_call.1} parent=1 // pred_fallthru
      _
    %v18 = vld [vmem:[%s0] sm:$0xf]
    %v19 = vld [vmem:[%s1] sm:$0xff]
    %v20 = vld [vmem:[%s1 + $0x8] sm:$0xff]
    %v21 = vld [vmem:[%s1 + $0x10] sm:$0xff]
    %v22 = vld [vmem:[%s1 + $0x18] sm:$0xff]
    %v23 = vld [vmem:[%s1 + $0x20] sm:$0xff]
    %v24 = vld [vmem:[%s1 + $0x28] sm:$0xff]
    %v25 = vld [vmem:[%s1 + $0x30] sm:$0xff]
    %v26 = vld [vmem:[%s1 + $0x38] sm:$0xff]
    %v27 = vld [vmem:[%s1 + $0x40] sm:$0xff]
    %v28 = vld [vmem:[%s1 + $0x48] sm:$0xff]
    %v29 = vld [vmem:[%s1 + $0x50] sm:$0xff]
    %v30 = vld [vmem:[%s1 + $0x58] sm:$0xff]
    %v31 = vld [vmem:[%s1 + $0x60] sm:$0xff]
    %v32 = vld [vmem:[%s1 + $0x68] sm:$0xff]
    %v33 = vld [vmem:[%s1 + $0x70] sm:$0xff]
    %v34 = vld [vmem:[%s1 + $0x78] sm:$0xff]
    %v35 = vld [vmem:[%s2] sm:$0x1]
    %v37 = vlaneseq
    %v38 = vshrl.u32 %v37, 7
    %v39 = vsub.s32 0, %v38
    %v40 = vrot.slane %v35, %v39
    %42 = vmatprep.subr.mxu0 0.0
    %v43 = vand.u32 %v34, 4294901760
    %44 = vmatpush1.msra.mxu0 %v43
    %45 = vmatprep.subr.mxu0 0.0
    %v46 = vand.u32 %v33, 4294901760
    %47 = vmatpush1.msra.mxu0 %v46
    %48 = vmatprep.subr.mxu0 0.0
    %v49 = vand.u32 %v32, 4294901760
    %50 = vmatpush1.msra.mxu0 %v49
    %51 = vmatprep.subr.mxu0 0.0
    %v52 = vand.u32 %v31, 4294901760
    %53 = vmatpush1.msra.mxu0 %v52
    %54 = vmatprep.subr.mxu0 0.0
    %v55 = vand.u32 %v30, 4294901760
    %56 = vmatpush1.msra.mxu0 %v55
    %57 = vmatprep.subr.mxu0 0.0
    %v58 = vand.u32 %v29, 4294901760
    %59 = vmatpush1.msra.mxu0 %v58
    %60 = vmatprep.subr.mxu0 0.0
    %v61 = vand.u32 %v28, 4294901760
    %62 = vmatpush1.msra.mxu0 %v61
    %63 = vmatprep.subr.mxu0 0.0
    %v64 = vand.u32 %v27, 4294901760
    %65 = vmatpush1.msra.mxu0 %v64
    %66 = vmatprep.subr.mxu0 0.0
    %v67 = vand.u32 %v26, 4294901760
    %68 = vmatpush1.msra.mxu0 %v67
    %69 = vmatprep.subr.mxu0 0.0
    %v70 = vand.u32 %v25, 4294901760
    %71 = vmatpush1.msra.mxu0 %v70
    %72 = vmatprep.subr.mxu0 0.0
    %v73 = vand.u32 %v24, 4294901760
    %74 = vmatpush1.msra.mxu0 %v73
    %75 = vmatprep.subr.mxu0 0.0
    %v76 = vand.u32 %v23, 4294901760
    %77 = vmatpush1.msra.mxu0 %v76
    %78 = vmatprep.subr.mxu0 0.0
    %v79 = vand.u32 %v22, 4294901760
    %80 = vmatpush1.msra.mxu0 %v79
    %81 = vmatprep.subr.mxu0 0.0
    %v82 = vand.u32 %v21, 4294901760
    %83 = vmatpush1.msra.mxu0 %v82
    %84 = vmatprep.subr.mxu0 0.0
    %v85 = vand.u32 %v20, 4294901760
    %86 = vmatpush1.msra.mxu0 %v85
    %87 = vmatprep.subr.mxu0 0.0
    %v88 = vand.u32 %v19, 4294901760
    %89 = vmatpush1.msra.mxu0 %v88
    %90 = vmatprep.subr.mxu0 0.0
    %91 = vmatpush2.msra.mxu0 0.0
    %92 = vmatprep.subr.mxu0 0.0
    %93 = vmatpush2.msra.mxu0 0.0
    %94 = vmatprep.subr.mxu0 0.0
    %95 = vmatpush2.msra.mxu0 0.0
    %96 = vmatprep.subr.mxu0 0.0
    %97 = vmatpush2.msra.mxu0 0.0
    %98 = vmatprep.subr.mxu0 0.0
    %99 = vmatpush2.msra.mxu0 0.0
    %100 = vmatprep.subr.mxu0 0.0
    %101 = vmatpush2.msra.mxu0 0.0
    %102 = vmatprep.subr.mxu0 0.0
    %103 = vmatpush2.msra.mxu0 0.0
    %104 = vmatprep.subr.mxu0 0.0
    %105 = vmatpush2.msra.mxu0 0.0
    %106 = vmatprep.subr.mxu0 0.0
    %107 = vmatpush2.msra.mxu0 0.0
    %108 = vmatprep.subr.mxu0 0.0
    %109 = vmatpush2.msra.mxu0 0.0
    %110 = vmatprep.subr.mxu0 0.0
    %111 = vmatpush2.msra.mxu0 0.0
    %112 = vmatprep.subr.mxu0 0.0
    %113 = vmatpush2.msra.mxu0 0.0
    %114 = vmatprep.subr.mxu0 0.0
    %115 = vmatpush2.msra.mxu0 0.0
    %116 = vmatprep.subr.mxu0 0.0
    %117 = vmatpush2.msra.mxu0 0.0
    %118 = vmatprep.subr.mxu0 0.0
    %119 = vmatpush2.msra.mxu0 0.0
    %120 = vmatprep.subr.mxu0 0.0
    %121 = vmatpush2.msra.mxu0 0.0
    %122 = vmatprep.mubr.f32.mxu0 0.0
    %v123 = vand.u32 %v18, 4294901760
    %v124 = vsub.f32 %v18, %v123
    %v125 = vand.u32 %v124, 4294901760
    %v126 = vsub.f32 %v124, %v125
    %v127 = vand.u32 %v126, 4294901760
    %128 = vmatmul.mubr.f32.gmra.mxu0 %v127
    %v129 = vpop.f32.mrf.mxu0
    %v130 = vadd.f32 %v40, %v129
    %v131 = vpop.f32.mrf.mxu0
    %132 = vdwg.mxu0
    %133 = vmatprep.subr.mxu0 0.0
    %v134 = vand.u32 %v34, 4294901760
    %v135 = vsub.f32 %v34, %v134
    %v136 = vand.u32 %v135, 4294901760
    %v137 = vsub.f32 %v135, %v136
    %v138 = vand.u32 %v137, 4294901760
    %139 = vmatpush1.msra.mxu0 %v138
    %140 = vmatprep.subr.mxu0 0.0
    %v141 = vand.u32 %v33, 4294901760
    %v142 = vsub.f32 %v33, %v141
    %v143 = vand.u32 %v142, 4294901760
    %v144 = vsub.f32 %v142, %v143
    %v145 = vand.u32 %v144, 4294901760
    %146 = vmatpush1.msra.mxu0 %v145
    %147 = vmatprep.subr.mxu0 0.0
    %v148 = vand.u32 %v32, 4294901760
    %v149 = vsub.f32 %v32, %v148
    %v150 = vand.u32 %v149, 4294901760
    %v151 = vsub.f32 %v149, %v150
    %v152 = vand.u32 %v151, 4294901760
    %153 = vmatpush1.msra.mxu0 %v152
    %154 = vmatprep.subr.mxu0 0.0
    %v155 = vand.u32 %v31, 4294901760
    %v156 = vsub.f32 %v31, %v155
    %v157 = vand.u32 %v156, 4294901760
    %v158 = vsub.f32 %v156, %v157
    %v159 = vand.u32 %v158, 4294901760
    %160 = vmatpush1.msra.mxu0 %v159
    %161 = vmatprep.subr.mxu0 0.0
    %v162 = vand.u32 %v30, 4294901760
    %v163 = vsub.f32 %v30, %v162
    %v164 = vand.u32 %v163, 4294901760
    %v165 = vsub.f32 %v163, %v164
    %v166 = vand.u32 %v165, 4294901760
    %167 = vmatpush1.msra.mxu0 %v166
    %168 = vmatprep.subr.mxu0 0.0
    %v169 = vand.u32 %v29, 4294901760
    %v170 = vsub.f32 %v29, %v169
    %v171 = vand.u32 %v170, 4294901760
    %v172 = vsub.f32 %v170, %v171
    %v173 = vand.u32 %v172, 4294901760
    %174 = vmatpush1.msra.mxu0 %v173
    %175 = vmatprep.subr.mxu0 0.0
    %v176 = vand.u32 %v28, 4294901760
    %v177 = vsub.f32 %v28, %v176
    %v178 = vand.u32 %v177, 4294901760
    %v179 = vsub.f32 %v177, %v178
    %v180 = vand.u32 %v179, 4294901760
    %181 = vmatpush1.msra.mxu0 %v180
    %182 = vmatprep.subr.mxu0 0.0
    %v183 = vand.u32 %v27, 4294901760
    %v184 = vsub.f32 %v27, %v183
    %v185 = vand.u32 %v184, 4294901760
    %v186 = vsub.f32 %v184, %v185
    %v187 = vand.u32 %v186, 4294901760
    %188 = vmatpush1.msra.mxu0 %v187
    %189 = vmatprep.subr.mxu0 0.0
    %v190 = vand.u32 %v26, 4294901760
    %v191 = vsub.f32 %v26, %v190
    %v192 = vand.u32 %v191, 4294901760
    %v193 = vsub.f32 %v191, %v192
    %v194 = vand.u32 %v193, 4294901760
    %195 = vmatpush1.msra.mxu0 %v194
    %196 = vmatprep.subr.mxu0 0.0
    %v197 = vand.u32 %v25, 4294901760
    %v198 = vsub.f32 %v25, %v197
    %v199 = vand.u32 %v198, 4294901760
    %v200 = vsub.f32 %v198, %v199
    %v201 = vand.u32 %v200, 4294901760
    %202 = vmatpush1.msra.mxu0 %v201
    %203 = vmatprep.subr.mxu0 0.0
    %v204 = vand.u32 %v24, 4294901760
    %v205 = vsub.f32 %v24, %v204
    %v206 = vand.u32 %v205, 4294901760
    %v207 = vsub.f32 %v205, %v206
    %v208 = vand.u32 %v207, 4294901760
    %209 = vmatpush1.msra.mxu0 %v208
    %210 = vmatprep.subr.mxu0 0.0
    %v211 = vand.u32 %v23, 4294901760
    %v212 = vsub.f32 %v23, %v211
    %v213 = vand.u32 %v212, 4294901760
    %v214 = vsub.f32 %v212, %v213
    %v215 = vand.u32 %v214, 4294901760
    %216 = vmatpush1.msra.mxu0 %v215
    %217 = vmatprep.subr.mxu0 0.0
    %v218 = vand.u32 %v22, 4294901760
    %v219 = vsub.f32 %v22, %v218
    %v220 = vand.u32 %v219, 4294901760
    %v221 = vsub.f32 %v219, %v220
    %v222 = vand.u32 %v221, 4294901760
    %223 = vmatpush1.msra.mxu0 %v222
    %224 = vmatprep.subr.mxu0 0.0
    %v225 = vand.u32 %v21, 4294901760
    %v226 = vsub.f32 %v21, %v225
    %v227 = vand.u32 %v226, 4294901760
    %v228 = vsub.f32 %v226, %v227
    %v229 = vand.u32 %v228, 4294901760
    %230 = vmatpush1.msra.mxu0 %v229
    %231 = vmatprep.subr.mxu0 0.0
    %v232 = vand.u32 %v20, 4294901760
    %v233 = vsub.f32 %v20, %v232
    %v234 = vand.u32 %v233, 4294901760
    %v235 = vsub.f32 %v233, %v234
    %v236 = vand.u32 %v235, 4294901760
    %237 = vmatpush1.msra.mxu0 %v236
    %238 = vmatprep.subr.mxu0 0.0
    %v239 = vand.u32 %v19, 4294901760
    %v240 = vsub.f32 %v19, %v239
    %v241 = vand.u32 %v240, 4294901760
    %v242 = vsub.f32 %v240, %v241
    %v243 = vand.u32 %v242, 4294901760
    %244 = vmatpush1.msra.mxu0 %v243
    %245 = vmatprep.subr.mxu0 0.0
    %246 = vmatpush2.msra.mxu0 0.0
    %247 = vmatprep.subr.mxu0 0.0
    %248 = vmatpush2.msra.mxu0 0.0
    %249 = vmatprep.subr.mxu0 0.0
    %250 = vmatpush2.msra.mxu0 0.0
    %251 = vmatprep.subr.mxu0 0.0
    %252 = vmatpush2.msra.mxu0 0.0
    %253 = vmatprep.subr.mxu0 0.0
    %254 = vmatpush2.msra.mxu0 0.0
    %255 = vmatprep.subr.mxu0 0.0
    %256 = vmatpush2.msra.mxu0 0.0
    %257 = vmatprep.subr.mxu0 0.0
    %258 = vmatpush2.msra.mxu0 0.0
    %259 = vmatprep.subr.mxu0 0.0
    %260 = vmatpush2.msra.mxu0 0.0
    %261 = vmatprep.subr.mxu0 0.0
    %262 = vmatpush2.msra.mxu0 0.0
    %263 = vmatprep.subr.mxu0 0.0
    %264 = vmatpush2.msra.mxu0 0.0
    %265 = vmatprep.subr.mxu0 0.0
    %266 = vmatpush2.msra.mxu0 0.0
    %267 = vmatprep.subr.mxu0 0.0
    %268 = vmatpush2.msra.mxu0 0.0
    %269 = vmatprep.subr.mxu0 0.0
    %270 = vmatpush2.msra.mxu0 0.0
    %271 = vmatprep.subr.mxu0 0.0
    %272 = vmatpush2.msra.mxu0 0.0
    %273 = vmatprep.subr.mxu0 0.0
    %274 = vmatpush2.msra.mxu0 0.0
    %275 = vmatprep.subr.mxu0 0.0
    %276 = vmatpush2.msra.mxu0 0.0
    %277 = vmatprep.mubr.f32.mxu0 0.0
    %v278 = vand.u32 %v18, 4294901760
    %279 = vmatmul.mubr.f32.gmra.mxu0 %v278
    %v280 = vpop.f32.mrf.mxu0
    %v281 = vadd.f32 %v130, %v280
    %v282 = vpop.f32.mrf.mxu0
    %283 = vdwg.mxu0
    %284 = vmatprep.subr.mxu0 0.0
    %v285 = vand.u32 %v34, 4294901760
    %v286 = vsub.f32 %v34, %v285
    %287 = vmatpush1.msra.mxu0 %v286
    %288 = vmatprep.subr.mxu0 0.0
    %v289 = vand.u32 %v33, 4294901760
    %v290 = vsub.f32 %v33, %v289
    %291 = vmatpush1.msra.mxu0 %v290
    %292 = vmatprep.subr.mxu0 0.0
    %v293 = vand.u32 %v32, 4294901760
    %v294 = vsub.f32 %v32, %v293
    %295 = vmatpush1.msra.mxu0 %v294
    %296 = vmatprep.subr.mxu0 0.0
    %v297 = vand.u32 %v31, 4294901760
    %v298 = vsub.f32 %v31, %v297
    %299 = vmatpush1.msra.mxu0 %v298
    %300 = vmatprep.subr.mxu0 0.0
    %v301 = vand.u32 %v30, 4294901760
    %v302 = vsub.f32 %v30, %v301
    %303 = vmatpush1.msra.mxu0 %v302
    %304 = vmatprep.subr.mxu0 0.0
    %v305 = vand.u32 %v29, 4294901760
    %v306 = vsub.f32 %v29, %v305
    %307 = vmatpush1.msra.mxu0 %v306
    %308 = vmatprep.subr.mxu0 0.0
    %v309 = vand.u32 %v28, 4294901760
    %v310 = vsub.f32 %v28, %v309
    %311 = vmatpush1.msra.mxu0 %v310
    %312 = vmatprep.subr.mxu0 0.0
    %v313 = vand.u32 %v27, 4294901760
    %v314 = vsub.f32 %v27, %v313
    %315 = vmatpush1.msra.mxu0 %v314
    %316 = vmatprep.subr.mxu0 0.0
    %v317 = vand.u32 %v26, 4294901760
    %v318 = vsub.f32 %v26, %v317
    %319 = vmatpush1.msra.mxu0 %v318
    %320 = vmatprep.subr.mxu0 0.0
    %v321 = vand.u32 %v25, 4294901760
    %v322 = vsub.f32 %v25, %v321
    %323 = vmatpush1.msra.mxu0 %v322
    %324 = vmatprep.subr.mxu0 0.0
    %v325 = vand.u32 %v24, 4294901760
    %v326 = vsub.f32 %v24, %v325
    %327 = vmatpush1.msra.mxu0 %v326
    %328 = vmatprep.subr.mxu0 0.0
    %v329 = vand.u32 %v23, 4294901760
    %v330 = vsub.f32 %v23, %v329
    %331 = vmatpush1.msra.mxu0 %v330
    %332 = vmatprep.subr.mxu0 0.0
    %v333 = vand.u32 %v22, 4294901760
    %v334 = vsub.f32 %v22, %v333
    %335 = vmatpush1.msra.mxu0 %v334
    %336 = vmatprep.subr.mxu0 0.0
    %v337 = vand.u32 %v21, 4294901760
    %v338 = vsub.f32 %v21, %v337
    %339 = vmatpush1.msra.mxu0 %v338
    %340 = vmatprep.subr.mxu0 0.0
    %v341 = vand.u32 %v20, 4294901760
    %v342 = vsub.f32 %v20, %v341
    %343 = vmatpush1.msra.mxu0 %v342
    %344 = vmatprep.subr.mxu0 0.0
    %v345 = vand.u32 %v19, 4294901760
    %v346 = vsub.f32 %v19, %v345
    %347 = vmatpush1.msra.mxu0 %v346
    %348 = vmatprep.subr.mxu0 0.0
    %349 = vmatpush2.msra.mxu0 0.0
    %350 = vmatprep.subr.mxu0 0.0
    %351 = vmatpush2.msra.mxu0 0.0
    %352 = vmatprep.subr.mxu0 0.0
    %353 = vmatpush2.msra.mxu0 0.0
    %354 = vmatprep.subr.mxu0 0.0
    %355 = vmatpush2.msra.mxu0 0.0
    %356 = vmatprep.subr.mxu0 0.0
    %357 = vmatpush2.msra.mxu0 0.0
    %358 = vmatprep.subr.mxu0 0.0
    %359 = vmatpush2.msra.mxu0 0.0
    %360 = vmatprep.subr.mxu0 0.0
    %361 = vmatpush2.msra.mxu0 0.0
    %362 = vmatprep.subr.mxu0 0.0
    %363 = vmatpush2.msra.mxu0 0.0
    %364 = vmatprep.subr.mxu0 0.0
    %365 = vmatpush2.msra.mxu0 0.0
    %366 = vmatprep.subr.mxu0 0.0
    %367 = vmatpush2.msra.mxu0 0.0
    %368 = vmatprep.subr.mxu0 0.0
    %369 = vmatpush2.msra.mxu0 0.0
    %370 = vmatprep.subr.mxu0 0.0
    %371 = vmatpush2.msra.mxu0 0.0
    %372 = vmatprep.subr.mxu0 0.0
    %373 = vmatpush2.msra.mxu0 0.0
    %374 = vmatprep.subr.mxu0 0.0
    %375 = vmatpush2.msra.mxu0 0.0
    %376 = vmatprep.subr.mxu0 0.0
    %377 = vmatpush2.msra.mxu0 0.0
    %378 = vmatprep.subr.mxu0 0.0
    %379 = vmatpush2.msra.mxu0 0.0
    %380 = vmatprep.mubr.f32.mxu0 0.0
    %v381 = vand.u32 %v18, 4294901760
    %v382 = vsub.f32 %v18, %v381
    %383 = vmatmul.mubr.f32.gmra.mxu0 %v382
    %v384 = vpop.f32.mrf.mxu0
    %v385 = vadd.f32 %v281, %v384
    %v386 = vpop.f32.mrf.mxu0
    %387 = vdwg.mxu0
    %388 = vmatprep.subr.mxu0 0.0
    %v389 = vand.u32 %v34, 4294901760
    %390 = vmatpush1.msra.mxu0 %v389
    %391 = vmatprep.subr.mxu0 0.0
    %v392 = vand.u32 %v33, 4294901760
    %393 = vmatpush1.msra.mxu0 %v392
    %394 = vmatprep.subr.mxu0 0.0
    %v395 = vand.u32 %v32, 4294901760
    %396 = vmatpush1.msra.mxu0 %v395
    %397 = vmatprep.subr.mxu0 0.0
    %v398 = vand.u32 %v31, 4294901760
    %399 = vmatpush1.msra.mxu0 %v398
    %400 = vmatprep.subr.mxu0 0.0
    %v401 = vand.u32 %v30, 4294901760
    %402 = vmatpush1.msra.mxu0 %v401
    %403 = vmatprep.subr.mxu0 0.0
    %v404 = vand.u32 %v29, 4294901760
    %405 = vmatpush1.msra.mxu0 %v404
    %406 = vmatprep.subr.mxu0 0.0
    %v407 = vand.u32 %v28, 4294901760
    %408 = vmatpush1.msra.mxu0 %v407
    %409 = vmatprep.subr.mxu0 0.0
    %v410 = vand.u32 %v27, 4294901760
    %411 = vmatpush1.msra.mxu0 %v410
    %412 = vmatprep.subr.mxu0 0.0
    %v413 = vand.u32 %v26, 4294901760
    %414 = vmatpush1.msra.mxu0 %v413
    %415 = vmatprep.subr.mxu0 0.0
    %v416 = vand.u32 %v25, 4294901760
    %417 = vmatpush1.msra.mxu0 %v416
    %418 = vmatprep.subr.mxu0 0.0
    %v419 = vand.u32 %v24, 4294901760
    %420 = vmatpush1.msra.mxu0 %v419
    %421 = vmatprep.subr.mxu0 0.0
    %v422 = vand.u32 %v23, 4294901760
    %423 = vmatpush1.msra.mxu0 %v422
    %424 = vmatprep.subr.mxu0 0.0
    %v425 = vand.u32 %v22, 4294901760
    %426 = vmatpush1.msra.mxu0 %v425
    %427 = vmatprep.subr.mxu0 0.0
    %v428 = vand.u32 %v21, 4294901760
    %429 = vmatpush1.msra.mxu0 %v428
    %430 = vmatprep.subr.mxu0 0.0
    %v431 = vand.u32 %v20, 4294901760
    %432 = vmatpush1.msra.mxu0 %v431
    %433 = vmatprep.subr.mxu0 0.0
    %v434 = vand.u32 %v19, 4294901760
    %435 = vmatpush1.msra.mxu0 %v434
    %436 = vmatprep.subr.mxu0 0.0
    %437 = vmatpush2.msra.mxu0 0.0
    %438 = vmatprep.subr.mxu0 0.0
    %439 = vmatpush2.msra.mxu0 0.0
    %440 = vmatprep.subr.mxu0 0.0
    %441 = vmatpush2.msra.mxu0 0.0
    %442 = vmatprep.subr.mxu0 0.0
    %443 = vmatpush2.msra.mxu0 0.0
    %444 = vmatprep.subr.mxu0 0.0
    %445 = vmatpush2.msra.mxu0 0.0
    %446 = vmatprep.subr.mxu0 0.0
    %447 = vmatpush2.msra.mxu0 0.0
    %448 = vmatprep.subr.mxu0 0.0
    %449 = vmatpush2.msra.mxu0 0.0
    %450 = vmatprep.subr.mxu0 0.0
    %451 = vmatpush2.msra.mxu0 0.0
    %452 = vmatprep.subr.mxu0 0.0
    %453 = vmatpush2.msra.mxu0 0.0
    %454 = vmatprep.subr.mxu0 0.0
    %455 = vmatpush2.msra.mxu0 0.0
    %456 = vmatprep.subr.mxu0 0.0
    %457 = vmatpush2.msra.mxu0 0.0
    %458 = vmatprep.subr.mxu0 0.0
    %459 = vmatpush2.msra.mxu0 0.0
    %460 = vmatprep.subr.mxu0 0.0
    %461 = vmatpush2.msra.mxu0 0.0
    %462 = vmatprep.subr.mxu0 0.0
    %463 = vmatpush2.msra.mxu0 0.0
    %464 = vmatprep.subr.mxu0 0.0
    %465 = vmatpush2.msra.mxu0 0.0
    %466 = vmatprep.subr.mxu0 0.0
    %467 = vmatpush2.msra.mxu0 0.0
    %468 = vmatprep.mubr.f32.mxu0 0.0
    %v469 = vand.u32 %v18, 4294901760
    %v470 = vsub.f32 %v18, %v469
    %v471 = vand.u32 %v470, 4294901760
    %472 = vmatmul.mubr.f32.gmra.mxu0 %v471
    %v473 = vpop.f32.mrf.mxu0
    %v474 = vadd.f32 %v385, %v473
    %v475 = vpop.f32.mrf.mxu0
    %476 = vdwg.mxu0
    %477 = vmatprep.subr.mxu0 0.0
    %v478 = vand.u32 %v34, 4294901760
    %v479 = vsub.f32 %v34, %v478
    %v480 = vand.u32 %v479, 4294901760
    %481 = vmatpush1.msra.mxu0 %v480
    %482 = vmatprep.subr.mxu0 0.0
    %v483 = vand.u32 %v33, 4294901760
    %v484 = vsub.f32 %v33, %v483
    %v485 = vand.u32 %v484, 4294901760
    %486 = vmatpush1.msra.mxu0 %v485
    %487 = vmatprep.subr.mxu0 0.0
    %v488 = vand.u32 %v32, 4294901760
    %v489 = vsub.f32 %v32, %v488
    %v490 = vand.u32 %v489, 4294901760
    %491 = vmatpush1.msra.mxu0 %v490
    %492 = vmatprep.subr.mxu0 0.0
    %v493 = vand.u32 %v31, 4294901760
    %v494 = vsub.f32 %v31, %v493
    %v495 = vand.u32 %v494, 4294901760
    %496 = vmatpush1.msra.mxu0 %v495
    %497 = vmatprep.subr.mxu0 0.0
    %v498 = vand.u32 %v30, 4294901760
    %v499 = vsub.f32 %v30, %v498
    %v500 = vand.u32 %v499, 4294901760
    %501 = vmatpush1.msra.mxu0 %v500
    %502 = vmatprep.subr.mxu0 0.0
    %v503 = vand.u32 %v29, 4294901760
    %v504 = vsub.f32 %v29, %v503
    %v505 = vand.u32 %v504, 4294901760
    %506 = vmatpush1.msra.mxu0 %v505
    %507 = vmatprep.subr.mxu0 0.0
    %v508 = vand.u32 %v28, 4294901760
    %v509 = vsub.f32 %v28, %v508
    %v510 = vand.u32 %v509, 4294901760
    %511 = vmatpush1.msra.mxu0 %v510
    %512 = vmatprep.subr.mxu0 0.0
    %v513 = vand.u32 %v27, 4294901760
    %v514 = vsub.f32 %v27, %v513
    %v515 = vand.u32 %v514, 4294901760
    %516 = vmatpush1.msra.mxu0 %v515
    %517 = vmatprep.subr.mxu0 0.0
    %v518 = vand.u32 %v26, 4294901760
    %v519 = vsub.f32 %v26, %v518
    %v520 = vand.u32 %v519, 4294901760
    %521 = vmatpush1.msra.mxu0 %v520
    %522 = vmatprep.subr.mxu0 0.0
    %v523 = vand.u32 %v25, 4294901760
    %v524 = vsub.f32 %v25, %v523
    %v525 = vand.u32 %v524, 4294901760
    %526 = vmatpush1.msra.mxu0 %v525
    %527 = vmatprep.subr.mxu0 0.0
    %v528 = vand.u32 %v24, 4294901760
    %v529 = vsub.f32 %v24, %v528
    %v530 = vand.u32 %v529, 4294901760
    %531 = vmatpush1.msra.mxu0 %v530
    %532 = vmatprep.subr.mxu0 0.0
    %v533 = vand.u32 %v23, 4294901760
    %v534 = vsub.f32 %v23, %v533
    %v535 = vand.u32 %v534, 4294901760
    %536 = vmatpush1.msra.mxu0 %v535
    %537 = vmatprep.subr.mxu0 0.0
    %v538 = vand.u32 %v22, 4294901760
    %v539 = vsub.f32 %v22, %v538
    %v540 = vand.u32 %v539, 4294901760
    %541 = vmatpush1.msra.mxu0 %v540
    %542 = vmatprep.subr.mxu0 0.0
    %v543 = vand.u32 %v21, 4294901760
    %v544 = vsub.f32 %v21, %v543
    %v545 = vand.u32 %v544, 4294901760
    %546 = vmatpush1.msra.mxu0 %v545
    %547 = vmatprep.subr.mxu0 0.0
    %v548 = vand.u32 %v20, 4294901760
    %v549 = vsub.f32 %v20, %v548
    %v550 = vand.u32 %v549, 4294901760
    %551 = vmatpush1.msra.mxu0 %v550
    %552 = vmatprep.subr.mxu0 0.0
    %v553 = vand.u32 %v19, 4294901760
    %v554 = vsub.f32 %v19, %v553
    %v555 = vand.u32 %v554, 4294901760
    %556 = vmatpush1.msra.mxu0 %v555
    %557 = vmatprep.subr.mxu0 0.0
    %558 = vmatpush2.msra.mxu0 0.0
    %559 = vmatprep.subr.mxu0 0.0
    %560 = vmatpush2.msra.mxu0 0.0
    %561 = vmatprep.subr.mxu0 0.0
    %562 = vmatpush2.msra.mxu0 0.0
    %563 = vmatprep.subr.mxu0 0.0
    %564 = vmatpush2.msra.mxu0 0.0
    %565 = vmatprep.subr.mxu0 0.0
    %566 = vmatpush2.msra.mxu0 0.0
    %567 = vmatprep.subr.mxu0 0.0
    %568 = vmatpush2.msra.mxu0 0.0
    %569 = vmatprep.subr.mxu0 0.0
    %570 = vmatpush2.msra.mxu0 0.0
    %571 = vmatprep.subr.mxu0 0.0
    %572 = vmatpush2.msra.mxu0 0.0
    %573 = vmatprep.subr.mxu0 0.0
    %574 = vmatpush2.msra.mxu0 0.0
    %575 = vmatprep.subr.mxu0 0.0
    %576 = vmatpush2.msra.mxu0 0.0
    %577 = vmatprep.subr.mxu0 0.0
    %578 = vmatpush2.msra.mxu0 0.0
    %579 = vmatprep.subr.mxu0 0.0
    %580 = vmatpush2.msra.mxu0 0.0
    %581 = vmatprep.subr.mxu0 0.0
    %582 = vmatpush2.msra.mxu0 0.0
    %583 = vmatprep.subr.mxu0 0.0
    %584 = vmatpush2.msra.mxu0 0.0
    %585 = vmatprep.subr.mxu0 0.0
    %586 = vmatpush2.msra.mxu0 0.0
    %587 = vmatprep.subr.mxu0 0.0
    %588 = vmatpush2.msra.mxu0 0.0
    %589 = vmatprep.mubr.f32.mxu0 0.0
    %v590 = vand.u32 %v18, 4294901760
    %591 = vmatmul.mubr.f32.gmra.mxu0 %v590
    %v592 = vpop.f32.mrf.mxu0
    %v593 = vadd.f32 %v474, %v592
    %v594 = vpop.f32.mrf.mxu0
    %595 = vdwg.mxu0
    %596 = vmatprep.subr.mxu0 0.0
    %v597 = vand.u32 %v34, 4294901760
    %598 = vmatpush1.msra.mxu0 %v597
    %599 = vmatprep.subr.mxu0 0.0
    %v600 = vand.u32 %v33, 4294901760
    %601 = vmatpush1.msra.mxu0 %v600
    %602 = vmatprep.subr.mxu0 0.0
    %v603 = vand.u32 %v32, 4294901760
    %604 = vmatpush1.msra.mxu0 %v603
    %605 = vmatprep.subr.mxu0 0.0
    %v606 = vand.u32 %v31, 4294901760
    %607 = vmatpush1.msra.mxu0 %v606
    %608 = vmatprep.subr.mxu0 0.0
    %v609 = vand.u32 %v30, 4294901760
    %610 = vmatpush1.msra.mxu0 %v609
    %611 = vmatprep.subr.mxu0 0.0
    %v612 = vand.u32 %v29, 4294901760
    %613 = vmatpush1.msra.mxu0 %v612
    %614 = vmatprep.subr.mxu0 0.0
    %v615 = vand.u32 %v28, 4294901760
    %616 = vmatpush1.msra.mxu0 %v615
    %617 = vmatprep.subr.mxu0 0.0
    %v618 = vand.u32 %v27, 4294901760
    %619 = vmatpush1.msra.mxu0 %v618
    %620 = vmatprep.subr.mxu0 0.0
    %v621 = vand.u32 %v26, 4294901760
    %622 = vmatpush1.msra.mxu0 %v621
    %623 = vmatprep.subr.mxu0 0.0
    %v624 = vand.u32 %v25, 4294901760
    %625 = vmatpush1.msra.mxu0 %v624
    %626 = vmatprep.subr.mxu0 0.0
    %v627 = vand.u32 %v24, 4294901760
    %628 = vmatpush1.msra.mxu0 %v627
    %629 = vmatprep.subr.mxu0 0.0
    %v630 = vand.u32 %v23, 4294901760
    %631 = vmatpush1.msra.mxu0 %v630
    %632 = vmatprep.subr.mxu0 0.0
    %v633 = vand.u32 %v22, 4294901760
    %634 = vmatpush1.msra.mxu0 %v633
    %635 = vmatprep.subr.mxu0 0.0
    %v636 = vand.u32 %v21, 4294901760
    %637 = vmatpush1.msra.mxu0 %v636
    %638 = vmatprep.subr.mxu0 0.0
    %v639 = vand.u32 %v20, 4294901760
    %640 = vmatpush1.msra.mxu0 %v639
    %641 = vmatprep.subr.mxu0 0.0
    %v642 = vand.u32 %v19, 4294901760
    %643 = vmatpush1.msra.mxu0 %v642
    %644 = vmatprep.subr.mxu0 0.0
    %645 = vmatpush2.msra.mxu0 0.0
    %646 = vmatprep.subr.mxu0 0.0
    %647 = vmatpush2.msra.mxu0 0.0
    %648 = vmatprep.subr.mxu0 0.0
    %649 = vmatpush2.msra.mxu0 0.0
    %650 = vmatprep.subr.mxu0 0.0
    %651 = vmatpush2.msra.mxu0 0.0
    %652 = vmatprep.subr.mxu0 0.0
    %653 = vmatpush2.msra.mxu0 0.0
    %654 = vmatprep.subr.mxu0 0.0
    %655 = vmatpush2.msra.mxu0 0.0
    %656 = vmatprep.subr.mxu0 0.0
    %657 = vmatpush2.msra.mxu0 0.0
    %658 = vmatprep.subr.mxu0 0.0
    %659 = vmatpush2.msra.mxu0 0.0
    %660 = vmatprep.subr.mxu0 0.0
    %661 = vmatpush2.msra.mxu0 0.0
    %662 = vmatprep.subr.mxu0 0.0
    %663 = vmatpush2.msra.mxu0 0.0
    %664 = vmatprep.subr.mxu0 0.0
    %665 = vmatpush2.msra.mxu0 0.0
    %666 = vmatprep.subr.mxu0 0.0
    %667 = vmatpush2.msra.mxu0 0.0
    %668 = vmatprep.subr.mxu0 0.0
    %669 = vmatpush2.msra.mxu0 0.0
    %670 = vmatprep.subr.mxu0 0.0
    %671 = vmatpush2.msra.mxu0 0.0
    %672 = vmatprep.subr.mxu0 0.0
    %673 = vmatpush2.msra.mxu0 0.0
    %674 = vmatprep.subr.mxu0 0.0
    %675 = vmatpush2.msra.mxu0 0.0
    %676 = vmatprep.mubr.f32.mxu0 0.0
    %v677 = vand.u32 %v18, 4294901760
    %678 = vmatmul.mubr.f32.gmra.mxu0 %v677
    %v679 = vpop.f32.mrf.mxu0
    %v680 = vadd.f32 %v593, %v679
    %v681 = vpop.f32.mrf.mxu0
    %682 = vdwg.mxu0
    %684 = vrot.lane.b32.xlu0 %v680, 124
    %v685 = vpop.permute.xlu0 %684
    %687 = vrot.lane.b32.xlu0 %v680, 12
    %v688 = vpop.permute.xlu0 %687
    %vm690 = vcmask 97280
    %v691 = vsel %vm690, %v685, %v688
    %v692 = vmax.f32 %v680, %v691
    %694 = vrot.lane.b32.xlu0 %v692, 120
    %v695 = vpop.permute.xlu0 %694
    %697 = vrot.lane.b32.xlu0 %v692, 8
    %v698 = vpop.permute.xlu0 %697
    %vm700 = vcmask 64512
    %v701 = vsel %vm700, %v695, %v698
    %v702 = vmax.f32 %v692, %v701
    %v703 = vsub.f32 %v680, %v702
    %v704 = vmul.f32 %v703, 1.442695
    %v705 = vpow.pop %v704
    %706 = vrot.lane.b32.xlu0 %v680, 112
    %v707 = vpop.permute.xlu0 %706
    %v709 = vmul.f32 %v705, %v707
    %v710 = vld [vmem:[%s3] sm:$0xff]
    %v711 = vld [vmem:[%s3 + $0x8] sm:$0xff]
    %vm712 = vcmask 130048
    %v714 = vsel %vm712, %v709, 0
    %716 = vmatprep.subr.mxu0 0.0
    %717 = vmatpush1.msra.mxu0 0.0
    %718 = vmatprep.subr.mxu0 0.0
    %719 = vmatpush1.msra.mxu0 0.0
    %720 = vmatprep.subr.mxu0 0.0
    %721 = vmatpush1.msra.mxu0 0.0
    %722 = vmatprep.subr.mxu0 0.0
    %723 = vmatpush1.msra.mxu0 0.0
    %724 = vmatprep.subr.mxu0 0.0
    %725 = vmatpush1.msra.mxu0 0.0
    %726 = vmatprep.subr.mxu0 0.0
    %727 = vmatpush1.msra.mxu0 0.0
    %728 = vmatprep.subr.mxu0 0.0
    %729 = vmatpush1.msra.mxu0 0.0
    %730 = vmatprep.subr.mxu0 0.0
    %731 = vmatpush1.msra.mxu0 0.0
    %732 = vmatprep.subr.mxu0 0.0
    %733 = vmatpush1.msra.mxu0 0.0
    %734 = vmatprep.subr.mxu0 0.0
    %735 = vmatpush1.msra.mxu0 0.0
    %736 = vmatprep.subr.mxu0 0.0
    %737 = vmatpush1.msra.mxu0 0.0
    %738 = vmatprep.subr.mxu0 0.0
    %739 = vmatpush1.msra.mxu0 0.0
    %740 = vmatprep.subr.mxu0 0.0
    %741 = vmatpush1.msra.mxu0 0.0
    %742 = vmatprep.subr.mxu0 0.0
    %743 = vmatpush1.msra.mxu0 0.0
    %744 = vmatprep.subr.mxu0 0.0
    %v745 = vand.u32 %v711, 4294901760
    %746 = vmatpush1.msra.mxu0 %v745
    %747 = vmatprep.subr.mxu0 0.0
    %v748 = vand.u32 %v710, 4294901760
    %749 = vmatpush1.msra.mxu0 %v748
    %750 = vmatprep.subr.mxu0 0.0
    %751 = vmatpush2.msra.mxu0 0.0
    %752 = vmatprep.subr.mxu0 0.0
    %753 = vmatpush2.msra.mxu0 0.0
    %754 = vmatprep.subr.mxu0 0.0
    %755 = vmatpush2.msra.mxu0 0.0
    %756 = vmatprep.subr.mxu0 0.0
    %757 = vmatpush2.msra.mxu0 0.0
    %758 = vmatprep.subr.mxu0 0.0
    %759 = vmatpush2.msra.mxu0 0.0
    %760 = vmatprep.subr.mxu0 0.0
    %761 = vmatpush2.msra.mxu0 0.0
    %762 = vmatprep.subr.mxu0 0.0
    %763 = vmatpush2.msra.mxu0 0.0
    %764 = vmatprep.subr.mxu0 0.0
    %765 = vmatpush2.msra.mxu0 0.0
    %766 = vmatprep.subr.mxu0 0.0
    %767 = vmatpush2.msra.mxu0 0.0
    %768 = vmatprep.subr.mxu0 0.0
    %769 = vmatpush2.msra.mxu0 0.0
    %770 = vmatprep.subr.mxu0 0.0
    %771 = vmatpush2.msra.mxu0 0.0
    %772 = vmatprep.subr.mxu0 0.0
    %773 = vmatpush2.msra.mxu0 0.0
    %774 = vmatprep.subr.mxu0 0.0
    %775 = vmatpush2.msra.mxu0 0.0
    %776 = vmatprep.subr.mxu0 0.0
    %777 = vmatpush2.msra.mxu0 0.0
    %778 = vmatprep.subr.mxu0 0.0
    %779 = vmatpush2.msra.mxu0 0.0
    %780 = vmatprep.subr.mxu0 0.0
    %781 = vmatpush2.msra.mxu0 0.0
    %782 = vmatprep.mubr.f32.mxu0 0.0
    %v783 = vand.u32 %v714, 4294901760
    %v784 = vsub.f32 %v714, %v783
    %v785 = vand.u32 %v784, 4294901760
    %v786 = vsub.f32 %v784, %v785
    %v787 = vand.u32 %v786, 4294901760
    %788 = vmatmul.mubr.f32.gmra.mxu0 %v787
    %v789 = vpop.f32.mrf.mxu0
    %v790 = vadd.f32 0.0, %v789
    %v791 = vpop.f32.mrf.mxu0
    %792 = vdwg.mxu0
    %793 = vmatprep.subr.mxu0 0.0
    %794 = vmatpush1.msra.mxu0 0.0
    %795 = vmatprep.subr.mxu0 0.0
    %796 = vmatpush1.msra.mxu0 0.0
    %797 = vmatprep.subr.mxu0 0.0
    %798 = vmatpush1.msra.mxu0 0.0
    %799 = vmatprep.subr.mxu0 0.0
    %800 = vmatpush1.msra.mxu0 0.0
    %801 = vmatprep.subr.mxu0 0.0
    %802 = vmatpush1.msra.mxu0 0.0
    %803 = vmatprep.subr.mxu0 0.0
    %804 = vmatpush1.msra.mxu0 0.0
    %805 = vmatprep.subr.mxu0 0.0
    %806 = vmatpush1.msra.mxu0 0.0
    %807 = vmatprep.subr.mxu0 0.0
    %808 = vmatpush1.msra.mxu0 0.0
    %809 = vmatprep.subr.mxu0 0.0
    %810 = vmatpush1.msra.mxu0 0.0
    %811 = vmatprep.subr.mxu0 0.0
    %812 = vmatpush1.msra.mxu0 0.0
    %813 = vmatprep.subr.mxu0 0.0
    %814 = vmatpush1.msra.mxu0 0.0
    %815 = vmatprep.subr.mxu0 0.0
    %816 = vmatpush1.msra.mxu0 0.0
    %817 = vmatprep.subr.mxu0 0.0
    %818 = vmatpush1.msra.mxu0 0.0
    %819 = vmatprep.subr.mxu0 0.0
    %820 = vmatpush1.msra.mxu0 0.0
    %821 = vmatprep.subr.mxu0 0.0
    %v822 = vand.u32 %v711, 4294901760
    %v823 = vsub.f32 %v711, %v822
    %v824 = vand.u32 %v823, 4294901760
    %v825 = vsub.f32 %v823, %v824
    %v826 = vand.u32 %v825, 4294901760
    %827 = vmatpush1.msra.mxu0 %v826
    %828 = vmatprep.subr.mxu0 0.0
    %v829 = vand.u32 %v710, 4294901760
    %v830 = vsub.f32 %v710, %v829
    %v831 = vand.u32 %v830, 4294901760
    %v832 = vsub.f32 %v830, %v831
    %v833 = vand.u32 %v832, 4294901760
    %834 = vmatpush1.msra.mxu0 %v833
    %835 = vmatprep.subr.mxu0 0.0
    %836 = vmatpush2.msra.mxu0 0.0
    %837 = vmatprep.subr.mxu0 0.0
    %838 = vmatpush2.msra.mxu0 0.0
    %839 = vmatprep.subr.mxu0 0.0
    %840 = vmatpush2.msra.mxu0 0.0
    %841 = vmatprep.subr.mxu0 0.0
    %842 = vmatpush2.msra.mxu0 0.0
    %843 = vmatprep.subr.mxu0 0.0
    %844 = vmatpush2.msra.mxu0 0.0
    %845 = vmatprep.subr.mxu0 0.0
    %846 = vmatpush2.msra.mxu0 0.0
    %847 = vmatprep.subr.mxu0 0.0
    %848 = vmatpush2.msra.mxu0 0.0
    %849 = vmatprep.subr.mxu0 0.0
    %850 = vmatpush2.msra.mxu0 0.0
    %851 = vmatprep.subr.mxu0 0.0
    %852 = vmatpush2.msra.mxu0 0.0
    %853 = vmatprep.subr.mxu0 0.0
    %854 = vmatpush2.msra.mxu0 0.0
    %855 = vmatprep.subr.mxu0 0.0
    %856 = vmatpush2.msra.mxu0 0.0
    %857 = vmatprep.subr.mxu0 0.0
    %858 = vmatpush2.msra.mxu0 0.0
    %859 = vmatprep.subr.mxu0 0.0
    %860 = vmatpush2.msra.mxu0 0.0
    %861 = vmatprep.subr.mxu0 0.0
    %862 = vmatpush2.msra.mxu0 0.0
    %863 = vmatprep.subr.mxu0 0.0
    %864 = vmatpush2.msra.mxu0 0.0
    %865 = vmatprep.subr.mxu0 0.0
    %866 = vmatpush2.msra.mxu0 0.0
    %867 = vmatprep.mubr.f32.mxu0 0.0
    %v868 = vand.u32 %v714, 4294901760
    %869 = vmatmul.mubr.f32.gmra.mxu0 %v868
    %v870 = vpop.f32.mrf.mxu0
    %v871 = vadd.f32 %v790, %v870
    %v872 = vpop.f32.mrf.mxu0
    %873 = vdwg.mxu0
    %874 = vmatprep.subr.mxu0 0.0
    %875 = vmatpush1.msra.mxu0 0.0
    %876 = vmatprep.subr.mxu0 0.0
    %877 = vmatpush1.msra.mxu0 0.0
    %878 = vmatprep.subr.mxu0 0.0
    %879 = vmatpush1.msra.mxu0 0.0
    %880 = vmatprep.subr.mxu0 0.0
    %881 = vmatpush1.msra.mxu0 0.0
    %882 = vmatprep.subr.mxu0 0.0
    %883 = vmatpush1.msra.mxu0 0.0
    %884 = vmatprep.subr.mxu0 0.0
    %885 = vmatpush1.msra.mxu0 0.0
    %886 = vmatprep.subr.mxu0 0.0
    %887 = vmatpush1.msra.mxu0 0.0
    %888 = vmatprep.subr.mxu0 0.0
    %889 = vmatpush1.msra.mxu0 0.0
    %890 = vmatprep.subr.mxu0 0.0
    %891 = vmatpush1.msra.mxu0 0.0
    %892 = vmatprep.subr.mxu0 0.0
    %893 = vmatpush1.msra.mxu0 0.0
    %894 = vmatprep.subr.mxu0 0.0
    %895 = vmatpush1.msra.mxu0 0.0
    %896 = vmatprep.subr.mxu0 0.0
    %897 = vmatpush1.msra.mxu0 0.0
    %898 = vmatprep.subr.mxu0 0.0
    %899 = vmatpush1.msra.mxu0 0.0
    %900 = vmatprep.subr.mxu0 0.0
    %901 = vmatpush1.msra.mxu0 0.0
    %902 = vmatprep.subr.mxu0 0.0
    %v903 = vand.u32 %v711, 4294901760
    %v904 = vsub.f32 %v711, %v903
    %905 = vmatpush1.msra.mxu0 %v904
    %906 = vmatprep.subr.mxu0 0.0
    %v907 = vand.u32 %v710, 4294901760
    %v908 = vsub.f32 %v710, %v907
    %909 = vmatpush1.msra.mxu0 %v908
    %910 = vmatprep.subr.mxu0 0.0
    %911 = vmatpush2.msra.mxu0 0.0
    %912 = vmatprep.subr.mxu0 0.0
    %913 = vmatpush2.msra.mxu0 0.0
    %914 = vmatprep.subr.mxu0 0.0
    %915 = vmatpush2.msra.mxu0 0.0
    %916 = vmatprep.subr.mxu0 0.0
    %917 = vmatpush2.msra.mxu0 0.0
    %918 = vmatprep.subr.mxu0 0.0
    %919 = vmatpush2.msra.mxu0 0.0
    %920 = vmatprep.subr.mxu0 0.0
    %921 = vmatpush2.msra.mxu0 0.0
    %922 = vmatprep.subr.mxu0 0.0
    %923 = vmatpush2.msra.mxu0 0.0
    %924 = vmatprep.subr.mxu0 0.0
    %925 = vmatpush2.msra.mxu0 0.0
    %926 = vmatprep.subr.mxu0 0.0
    %927 = vmatpush2.msra.mxu0 0.0
    %928 = vmatprep.subr.mxu0 0.0
    %929 = vmatpush2.msra.mxu0 0.0
    %930 = vmatprep.subr.mxu0 0.0
    %931 = vmatpush2.msra.mxu0 0.0
    %932 = vmatprep.subr.mxu0 0.0
    %933 = vmatpush2.msra.mxu0 0.0
    %934 = vmatprep.subr.mxu0 0.0
    %935 = vmatpush2.msra.mxu0 0.0
    %936 = vmatprep.subr.mxu0 0.0
    %937 = vmatpush2.msra.mxu0 0.0
    %938 = vmatprep.subr.mxu0 0.0
    %939 = vmatpush2.msra.mxu0 0.0
    %940 = vmatprep.subr.mxu0 0.0
    %941 = vmatpush2.msra.mxu0 0.0
    %942 = vmatprep.mubr.f32.mxu0 0.0
    %v943 = vand.u32 %v714, 4294901760
    %v944 = vsub.f32 %v714, %v943
    %945 = vmatmul.mubr.f32.gmra.mxu0 %v944
    %v946 = vpop.f32.mrf.mxu0
    %v947 = vadd.f32 %v871, %v946
    %v948 = vpop.f32.mrf.mxu0
    %949 = vdwg.mxu0
    %950 = vmatprep.subr.mxu0 0.0
    %951 = vmatpush1.msra.mxu0 0.0
    %952 = vmatprep.subr.mxu0 0.0
    %953 = vmatpush1.msra.mxu0 0.0
    %954 = vmatprep.subr.mxu0 0.0
    %955 = vmatpush1.msra.mxu0 0.0
    %956 = vmatprep.subr.mxu0 0.0
    %957 = vmatpush1.msra.mxu0 0.0
    %958 = vmatprep.subr.mxu0 0.0
    %959 = vmatpush1.msra.mxu0 0.0
    %960 = vmatprep.subr.mxu0 0.0
    %961 = vmatpush1.msra.mxu0 0.0
    %962 = vmatprep.subr.mxu0 0.0
    %963 = vmatpush1.msra.mxu0 0.0
    %964 = vmatprep.subr.mxu0 0.0
    %965 = vmatpush1.msra.mxu0 0.0
    %966 = vmatprep.subr.mxu0 0.0
    %967 = vmatpush1.msra.mxu0 0.0
    %968 = vmatprep.subr.mxu0 0.0
    %969 = vmatpush1.msra.mxu0 0.0
    %970 = vmatprep.subr.mxu0 0.0
    %971 = vmatpush1.msra.mxu0 0.0
    %972 = vmatprep.subr.mxu0 0.0
    %973 = vmatpush1.msra.mxu0 0.0
    %974 = vmatprep.subr.mxu0 0.0
    %975 = vmatpush1.msra.mxu0 0.0
    %976 = vmatprep.subr.mxu0 0.0
    %977 = vmatpush1.msra.mxu0 0.0
    %978 = vmatprep.subr.mxu0 0.0
    %v979 = vand.u32 %v711, 4294901760
    %980 = vmatpush1.msra.mxu0 %v979
    %981 = vmatprep.subr.mxu0 0.0
    %v982 = vand.u32 %v710, 4294901760
    %983 = vmatpush1.msra.mxu0 %v982
    %984 = vmatprep.subr.mxu0 0.0
    %985 = vmatpush2.msra.mxu0 0.0
    %986 = vmatprep.subr.mxu0 0.0
    %987 = vmatpush2.msra.mxu0 0.0
    %988 = vmatprep.subr.mxu0 0.0
    %989 = vmatpush2.msra.mxu0 0.0
    %990 = vmatprep.subr.mxu0 0.0
    %991 = vmatpush2.msra.mxu0 0.0
    %992 = vmatprep.subr.mxu0 0.0
    %993 = vmatpush2.msra.mxu0 0.0
    %994 = vmatprep.subr.mxu0 0.0
    %995 = vmatpush2.msra.mxu0 0.0
    %996 = vmatprep.subr.mxu0 0.0
    %997 = vmatpush2.msra.mxu0 0.0
    %998 = vmatprep.subr.mxu0 0.0
    %999 = vmatpush2.msra.mxu0 0.0
    %1000 = vmatprep.subr.mxu0 0.0
    %1001 = vmatpush2.msra.mxu0 0.0
    %1002 = vmatprep.subr.mxu0 0.0
    %1003 = vmatpush2.msra.mxu0 0.0
    %1004 = vmatprep.subr.mxu0 0.0
    %1005 = vmatpush2.msra.mxu0 0.0
    %1006 = vmatprep.subr.mxu0 0.0
    %1007 = vmatpush2.msra.mxu0 0.0
    %1008 = vmatprep.subr.mxu0 0.0
    %1009 = vmatpush2.msra.mxu0 0.0
    %1010 = vmatprep.subr.mxu0 0.0
    %1011 = vmatpush2.msra.mxu0 0.0
    %1012 = vmatprep.subr.mxu0 0.0
    %1013 = vmatpush2.msra.mxu0 0.0
    %1014 = vmatprep.subr.mxu0 0.0
    %1015 = vmatpush2.msra.mxu0 0.0
    %1016 = vmatprep.mubr.f32.mxu0 0.0
    %v1017 = vand.u32 %v714, 4294901760
    %v1018 = vsub.f32 %v714, %v1017
    %v1019 = vand.u32 %v1018, 4294901760
    %1020 = vmatmul.mubr.f32.gmra.mxu0 %v1019
    %v1021 = vpop.f32.mrf.mxu0
    %v1022 = vadd.f32 %v947, %v1021
    %v1023 = vpop.f32.mrf.mxu0
    %1024 = vdwg.mxu0
    %1025 = vmatprep.subr.mxu0 0.0
    %1026 = vmatpush1.msra.mxu0 0.0
    %1027 = vmatprep.subr.mxu0 0.0
    %1028 = vmatpush1.msra.mxu0 0.0
    %1029 = vmatprep.subr.mxu0 0.0
    %1030 = vmatpush1.msra.mxu0 0.0
    %1031 = vmatprep.subr.mxu0 0.0
    %1032 = vmatpush1.msra.mxu0 0.0
    %1033 = vmatprep.subr.mxu0 0.0
    %1034 = vmatpush1.msra.mxu0 0.0
    %1035 = vmatprep.subr.mxu0 0.0
    %1036 = vmatpush1.msra.mxu0 0.0
    %1037 = vmatprep.subr.mxu0 0.0
    %1038 = vmatpush1.msra.mxu0 0.0
    %1039 = vmatprep.subr.mxu0 0.0
    %1040 = vmatpush1.msra.mxu0 0.0
    %1041 = vmatprep.subr.mxu0 0.0
    %1042 = vmatpush1.msra.mxu0 0.0
    %1043 = vmatprep.subr.mxu0 0.0
    %1044 = vmatpush1.msra.mxu0 0.0
    %1045 = vmatprep.subr.mxu0 0.0
    %1046 = vmatpush1.msra.mxu0 0.0
    %1047 = vmatprep.subr.mxu0 0.0
    %1048 = vmatpush1.msra.mxu0 0.0
    %1049 = vmatprep.subr.mxu0 0.0
    %1050 = vmatpush1.msra.mxu0 0.0
    %1051 = vmatprep.subr.mxu0 0.0
    %1052 = vmatpush1.msra.mxu0 0.0
    %1053 = vmatprep.subr.mxu0 0.0
    %v1054 = vand.u32 %v711, 4294901760
    %v1055 = vsub.f32 %v711, %v1054
    %v1056 = vand.u32 %v1055, 4294901760
    %1057 = vmatpush1.msra.mxu0 %v1056
    %1058 = vmatprep.subr.mxu0 0.0
    %v1059 = vand.u32 %v710, 4294901760
    %v1060 = vsub.f32 %v710, %v1059
    %v1061 = vand.u32 %v1060, 4294901760
    %1062 = vmatpush1.msra.mxu0 %v1061
    %1063 = vmatprep.subr.mxu0 0.0
    %1064 = vmatpush2.msra.mxu0 0.0
    %1065 = vmatprep.subr.mxu0 0.0
    %1066 = vmatpush2.msra.mxu0 0.0
    %1067 = vmatprep.subr.mxu0 0.0
    %1068 = vmatpush2.msra.mxu0 0.0
    %1069 = vmatprep.subr.mxu0 0.0
    %1070 = vmatpush2.msra.mxu0 0.0
    %1071 = vmatprep.subr.mxu0 0.0
    %1072 = vmatpush2.msra.mxu0 0.0
    %1073 = vmatprep.subr.mxu0 0.0
    %1074 = vmatpush2.msra.mxu0 0.0
    %1075 = vmatprep.subr.mxu0 0.0
    %1076 = vmatpush2.msra.mxu0 0.0
    %1077 = vmatprep.subr.mxu0 0.0
    %1078 = vmatpush2.msra.mxu0 0.0
    %1079 = vmatprep.subr.mxu0 0.0
    %1080 = vmatpush2.msra.mxu0 0.0
    %1081 = vmatprep.subr.mxu0 0.0
    %1082 = vmatpush2.msra.mxu0 0.0
    %1083 = vmatprep.subr.mxu0 0.0
    %1084 = vmatpush2.msra.mxu0 0.0
    %1085 = vmatprep.subr.mxu0 0.0
    %1086 = vmatpush2.msra.mxu0 0.0
    %1087 = vmatprep.subr.mxu0 0.0
    %1088 = vmatpush2.msra.mxu0 0.0
    %1089 = vmatprep.subr.mxu0 0.0
    %1090 = vmatpush2.msra.mxu0 0.0
    %1091 = vmatprep.subr.mxu0 0.0
    %1092 = vmatpush2.msra.mxu0 0.0
    %1093 = vmatprep.subr.mxu0 0.0
    %1094 = vmatpush2.msra.mxu0 0.0
    %1095 = vmatprep.mubr.f32.mxu0 0.0
    %v1096 = vand.u32 %v714, 4294901760
    %1097 = vmatmul.mubr.f32.gmra.mxu0 %v1096
    %v1098 = vpop.f32.mrf.mxu0
    %v1099 = vadd.f32 %v1022, %v1098
    %v1100 = vpop.f32.mrf.mxu0
    %1101 = vdwg.mxu0
    %1102 = vmatprep.subr.mxu0 0.0
    %1103 = vmatpush1.msra.mxu0 0.0
    %1104 = vmatprep.subr.mxu0 0.0
    %1105 = vmatpush1.msra.mxu0 0.0
    %1106 = vmatprep.subr.mxu0 0.0
    %1107 = vmatpush1.msra.mxu0 0.0
    %1108 = vmatprep.subr.mxu0 0.0
    %1109 = vmatpush1.msra.mxu0 0.0
    %1110 = vmatprep.subr.mxu0 0.0
    %1111 = vmatpush1.msra.mxu0 0.0
    %1112 = vmatprep.subr.mxu0 0.0
    %1113 = vmatpush1.msra.mxu0 0.0
    %1114 = vmatprep.subr.mxu0 0.0
    %1115 = vmatpush1.msra.mxu0 0.0
    %1116 = vmatprep.subr.mxu0 0.0
    %1117 = vmatpush1.msra.mxu0 0.0
    %1118 = vmatprep.subr.mxu0 0.0
    %1119 = vmatpush1.msra.mxu0 0.0
    %1120 = vmatprep.subr.mxu0 0.0
    %1121 = vmatpush1.msra.mxu0 0.0
    %1122 = vmatprep.subr.mxu0 0.0
    %1123 = vmatpush1.msra.mxu0 0.0
    %1124 = vmatprep.subr.mxu0 0.0
    %1125 = vmatpush1.msra.mxu0 0.0
    %1126 = vmatprep.subr.mxu0 0.0
    %1127 = vmatpush1.msra.mxu0 0.0
    %1128 = vmatprep.subr.mxu0 0.0
    %1129 = vmatpush1.msra.mxu0 0.0
    %1130 = vmatprep.subr.mxu0 0.0
    %v1131 = vand.u32 %v711, 4294901760
    %1132 = vmatpush1.msra.mxu0 %v1131
    %1133 = vmatprep.subr.mxu0 0.0
    %v1134 = vand.u32 %v710, 4294901760
    %1135 = vmatpush1.msra.mxu0 %v1134
    %1136 = vmatprep.subr.mxu0 0.0
    %1137 = vmatpush2.msra.mxu0 0.0
    %1138 = vmatprep.subr.mxu0 0.0
    %1139 = vmatpush2.msra.mxu0 0.0
    %1140 = vmatprep.subr.mxu0 0.0
    %1141 = vmatpush2.msra.mxu0 0.0
    %1142 = vmatprep.subr.mxu0 0.0
    %1143 = vmatpush2.msra.mxu0 0.0
    %1144 = vmatprep.subr.mxu0 0.0
    %1145 = vmatpush2.msra.mxu0 0.0
    %1146 = vmatprep.subr.mxu0 0.0
    %1147 = vmatpush2.msra.mxu0 0.0
    %1148 = vmatprep.subr.mxu0 0.0
    %1149 = vmatpush2.msra.mxu0 0.0
    %1150 = vmatprep.subr.mxu0 0.0
    %1151 = vmatpush2.msra.mxu0 0.0
    %1152 = vmatprep.subr.mxu0 0.0
    %1153 = vmatpush2.msra.mxu0 0.0
    %1154 = vmatprep.subr.mxu0 0.0
    %1155 = vmatpush2.msra.mxu0 0.0
    %1156 = vmatprep.subr.mxu0 0.0
    %1157 = vmatpush2.msra.mxu0 0.0
    %1158 = vmatprep.subr.mxu0 0.0
    %1159 = vmatpush2.msra.mxu0 0.0
    %1160 = vmatprep.subr.mxu0 0.0
    %1161 = vmatpush2.msra.mxu0 0.0
    %1162 = vmatprep.subr.mxu0 0.0
    %1163 = vmatpush2.msra.mxu0 0.0
    %1164 = vmatprep.subr.mxu0 0.0
    %1165 = vmatpush2.msra.mxu0 0.0
    %1166 = vmatprep.subr.mxu0 0.0
    %1167 = vmatpush2.msra.mxu0 0.0
    %1168 = vmatprep.mubr.f32.mxu0 0.0
    %v1169 = vand.u32 %v714, 4294901760
    %1170 = vmatmul.mubr.f32.gmra.mxu0 %v1169
    %v1171 = vpop.f32.mrf.mxu0
    %v1172 = vadd.f32 %v1099, %v1171
    %v1173 = vpop.f32.mrf.mxu0
    %1174 = vdwg.mxu0
    %v1176 = vsel %vm712, %v705, 0
    %1178 = vmatprep.subr.mxu0 0.0
    %1179 = vmatpush1.msra.mxu0 0.0
    %1180 = vmatprep.subr.mxu0 0.0
    %1181 = vmatpush1.msra.mxu0 0.0
    %1182 = vmatprep.subr.mxu0 0.0
    %1183 = vmatpush1.msra.mxu0 0.0
    %1184 = vmatprep.subr.mxu0 0.0
    %1185 = vmatpush1.msra.mxu0 0.0
    %1186 = vmatprep.subr.mxu0 0.0
    %1187 = vmatpush1.msra.mxu0 0.0
    %1188 = vmatprep.subr.mxu0 0.0
    %1189 = vmatpush1.msra.mxu0 0.0
    %1190 = vmatprep.subr.mxu0 0.0
    %1191 = vmatpush1.msra.mxu0 0.0
    %1192 = vmatprep.subr.mxu0 0.0
    %1193 = vmatpush1.msra.mxu0 0.0
    %1194 = vmatprep.subr.mxu0 0.0
    %1195 = vmatpush1.msra.mxu0 0.0
    %1196 = vmatprep.subr.mxu0 0.0
    %1197 = vmatpush1.msra.mxu0 0.0
    %1198 = vmatprep.subr.mxu0 0.0
    %1199 = vmatpush1.msra.mxu0 0.0
    %1200 = vmatprep.subr.mxu0 0.0
    %1201 = vmatpush1.msra.mxu0 0.0
    %1202 = vmatprep.subr.mxu0 0.0
    %1203 = vmatpush1.msra.mxu0 0.0
    %1204 = vmatprep.subr.mxu0 0.0
    %1205 = vmatpush1.msra.mxu0 0.0
    %1206 = vmatprep.subr.mxu0 0.0
    %v1207 = vand.u32 %v711, 4294901760
    %1208 = vmatpush1.msra.mxu0 %v1207
    %1209 = vmatprep.subr.mxu0 0.0
    %v1210 = vand.u32 %v710, 4294901760
    %1211 = vmatpush1.msra.mxu0 %v1210
    %1212 = vmatprep.subr.mxu0 0.0
    %1213 = vmatpush2.msra.mxu0 0.0
    %1214 = vmatprep.subr.mxu0 0.0
    %1215 = vmatpush2.msra.mxu0 0.0
    %1216 = vmatprep.subr.mxu0 0.0
    %1217 = vmatpush2.msra.mxu0 0.0
    %1218 = vmatprep.subr.mxu0 0.0
    %1219 = vmatpush2.msra.mxu0 0.0
    %1220 = vmatprep.subr.mxu0 0.0
    %1221 = vmatpush2.msra.mxu0 0.0
    %1222 = vmatprep.subr.mxu0 0.0
    %1223 = vmatpush2.msra.mxu0 0.0
    %1224 = vmatprep.subr.mxu0 0.0
    %1225 = vmatpush2.msra.mxu0 0.0
    %1226 = vmatprep.subr.mxu0 0.0
    %1227 = vmatpush2.msra.mxu0 0.0
    %1228 = vmatprep.subr.mxu0 0.0
    %1229 = vmatpush2.msra.mxu0 0.0
    %1230 = vmatprep.subr.mxu0 0.0
    %1231 = vmatpush2.msra.mxu0 0.0
    %1232 = vmatprep.subr.mxu0 0.0
    %1233 = vmatpush2.msra.mxu0 0.0
    %1234 = vmatprep.subr.mxu0 0.0
    %1235 = vmatpush2.msra.mxu0 0.0
    %1236 = vmatprep.subr.mxu0 0.0
    %1237 = vmatpush2.msra.mxu0 0.0
    %1238 = vmatprep.subr.mxu0 0.0
    %1239 = vmatpush2.msra.mxu0 0.0
    %1240 = vmatprep.subr.mxu0 0.0
    %1241 = vmatpush2.msra.mxu0 0.0
    %1242 = vmatprep.subr.mxu0 0.0
    %1243 = vmatpush2.msra.mxu0 0.0
    %1244 = vmatprep.mubr.f32.mxu0 0.0
    %v1245 = vand.u32 %v1176, 4294901760
    %v1246 = vsub.f32 %v1176, %v1245
    %v1247 = vand.u32 %v1246, 4294901760
    %v1248 = vsub.f32 %v1246, %v1247
    %v1249 = vand.u32 %v1248, 4294901760
    %1250 = vmatmul.mubr.f32.gmra.mxu0 %v1249
    %v1251 = vpop.f32.mrf.mxu0
    %v1252 = vadd.f32 0.0, %v1251
    %v1253 = vpop.f32.mrf.mxu0
    %1254 = vdwg.mxu0
    %1255 = vmatprep.subr.mxu0 0.0
    %1256 = vmatpush1.msra.mxu0 0.0
    %1257 = vmatprep.subr.mxu0 0.0
    %1258 = vmatpush1.msra.mxu0 0.0
    %1259 = vmatprep.subr.mxu0 0.0
    %1260 = vmatpush1.msra.mxu0 0.0
    %1261 = vmatprep.subr.mxu0 0.0
    %1262 = vmatpush1.msra.mxu0 0.0
    %1263 = vmatprep.subr.mxu0 0.0
    %1264 = vmatpush1.msra.mxu0 0.0
    %1265 = vmatprep.subr.mxu0 0.0
    %1266 = vmatpush1.msra.mxu0 0.0
    %1267 = vmatprep.subr.mxu0 0.0
    %1268 = vmatpush1.msra.mxu0 0.0
    %1269 = vmatprep.subr.mxu0 0.0
    %1270 = vmatpush1.msra.mxu0 0.0
    %1271 = vmatprep.subr.mxu0 0.0
    %1272 = vmatpush1.msra.mxu0 0.0
    %1273 = vmatprep.subr.mxu0 0.0
    %1274 = vmatpush1.msra.mxu0 0.0
    %1275 = vmatprep.subr.mxu0 0.0
    %1276 = vmatpush1.msra.mxu0 0.0
    %1277 = vmatprep.subr.mxu0 0.0
    %1278 = vmatpush1.msra.mxu0 0.0
    %1279 = vmatprep.subr.mxu0 0.0
    %1280 = vmatpush1.msra.mxu0 0.0
    %1281 = vmatprep.subr.mxu0 0.0
    %1282 = vmatpush1.msra.mxu0 0.0
    %1283 = vmatprep.subr.mxu0 0.0
    %v1284 = vand.u32 %v711, 4294901760
    %v1285 = vsub.f32 %v711, %v1284
    %v1286 = vand.u32 %v1285, 4294901760
    %v1287 = vsub.f32 %v1285, %v1286
    %v1288 = vand.u32 %v1287, 4294901760
    %1289 = vmatpush1.msra.mxu0 %v1288
    %1290 = vmatprep.subr.mxu0 0.0
    %v1291 = vand.u32 %v710, 4294901760
    %v1292 = vsub.f32 %v710, %v1291
    %v1293 = vand.u32 %v1292, 4294901760
    %v1294 = vsub.f32 %v1292, %v1293
    %v1295 = vand.u32 %v1294, 4294901760
    %1296 = vmatpush1.msra.mxu0 %v1295
    %1297 = vmatprep.subr.mxu0 0.0
    %1298 = vmatpush2.msra.mxu0 0.0
    %1299 = vmatprep.subr.mxu0 0.0
    %1300 = vmatpush2.msra.mxu0 0.0
    %1301 = vmatprep.subr.mxu0 0.0
    %1302 = vmatpush2.msra.mxu0 0.0
    %1303 = vmatprep.subr.mxu0 0.0
    %1304 = vmatpush2.msra.mxu0 0.0
    %1305 = vmatprep.subr.mxu0 0.0
    %1306 = vmatpush2.msra.mxu0 0.0
    %1307 = vmatprep.subr.mxu0 0.0
    %1308 = vmatpush2.msra.mxu0 0.0
    %1309 = vmatprep.subr.mxu0 0.0
    %1310 = vmatpush2.msra.mxu0 0.0
    %1311 = vmatprep.subr.mxu0 0.0
    %1312 = vmatpush2.msra.mxu0 0.0
    %1313 = vmatprep.subr.mxu0 0.0
    %1314 = vmatpush2.msra.mxu0 0.0
    %1315 = vmatprep.subr.mxu0 0.0
    %1316 = vmatpush2.msra.mxu0 0.0
    %1317 = vmatprep.subr.mxu0 0.0
    %1318 = vmatpush2.msra.mxu0 0.0
    %1319 = vmatprep.subr.mxu0 0.0
    %1320 = vmatpush2.msra.mxu0 0.0
    %1321 = vmatprep.subr.mxu0 0.0
    %1322 = vmatpush2.msra.mxu0 0.0
    %1323 = vmatprep.subr.mxu0 0.0
    %1324 = vmatpush2.msra.mxu0 0.0
    %1325 = vmatprep.subr.mxu0 0.0
    %1326 = vmatpush2.msra.mxu0 0.0
    %1327 = vmatprep.subr.mxu0 0.0
    %1328 = vmatpush2.msra.mxu0 0.0
    %1329 = vmatprep.mubr.f32.mxu0 0.0
    %v1330 = vand.u32 %v1176, 4294901760
    %1331 = vmatmul.mubr.f32.gmra.mxu0 %v1330
    %v1332 = vpop.f32.mrf.mxu0
    %v1333 = vadd.f32 %v1252, %v1332
    %v1334 = vpop.f32.mrf.mxu0
    %1335 = vdwg.mxu0
    %1336 = vmatprep.subr.mxu0 0.0
    %1337 = vmatpush1.msra.mxu0 0.0
    %1338 = vmatprep.subr.mxu0 0.0
    %1339 = vmatpush1.msra.mxu0 0.0
    %1340 = vmatprep.subr.mxu0 0.0
    %1341 = vmatpush1.msra.mxu0 0.0
    %1342 = vmatprep.subr.mxu0 0.0
    %1343 = vmatpush1.msra.mxu0 0.0
    %1344 = vmatprep.subr.mxu0 0.0
    %1345 = vmatpush1.msra.mxu0 0.0
    %1346 = vmatprep.subr.mxu0 0.0
    %1347 = vmatpush1.msra.mxu0 0.0
    %1348 = vmatprep.subr.mxu0 0.0
    %1349 = vmatpush1.msra.mxu0 0.0
    %1350 = vmatprep.subr.mxu0 0.0
    %1351 = vmatpush1.msra.mxu0 0.0
    %1352 = vmatprep.subr.mxu0 0.0
    %1353 = vmatpush1.msra.mxu0 0.0
    %1354 = vmatprep.subr.mxu0 0.0
    %1355 = vmatpush1.msra.mxu0 0.0
    %1356 = vmatprep.subr.mxu0 0.0
    %1357 = vmatpush1.msra.mxu0 0.0
    %1358 = vmatprep.subr.mxu0 0.0
    %1359 = vmatpush1.msra.mxu0 0.0
    %1360 = vmatprep.subr.mxu0 0.0
    %1361 = vmatpush1.msra.mxu0 0.0
    %1362 = vmatprep.subr.mxu0 0.0
    %1363 = vmatpush1.msra.mxu0 0.0
    %1364 = vmatprep.subr.mxu0 0.0
    %v1365 = vand.u32 %v711, 4294901760
    %v1366 = vsub.f32 %v711, %v1365
    %1367 = vmatpush1.msra.mxu0 %v1366
    %1368 = vmatprep.subr.mxu0 0.0
    %v1369 = vand.u32 %v710, 4294901760
    %v1370 = vsub.f32 %v710, %v1369
    %1371 = vmatpush1.msra.mxu0 %v1370
    %1372 = vmatprep.subr.mxu0 0.0
    %1373 = vmatpush2.msra.mxu0 0.0
    %1374 = vmatprep.subr.mxu0 0.0
    %1375 = vmatpush2.msra.mxu0 0.0
    %1376 = vmatprep.subr.mxu0 0.0
    %1377 = vmatpush2.msra.mxu0 0.0
    %1378 = vmatprep.subr.mxu0 0.0
    %1379 = vmatpush2.msra.mxu0 0.0
    %1380 = vmatprep.subr.mxu0 0.0
    %1381 = vmatpush2.msra.mxu0 0.0
    %1382 = vmatprep.subr.mxu0 0.0
    %1383 = vmatpush2.msra.mxu0 0.0
    %1384 = vmatprep.subr.mxu0 0.0
    %1385 = vmatpush2.msra.mxu0 0.0
    %1386 = vmatprep.subr.mxu0 0.0
    %1387 = vmatpush2.msra.mxu0 0.0
    %1388 = vmatprep.subr.mxu0 0.0
    %1389 = vmatpush2.msra.mxu0 0.0
    %1390 = vmatprep.subr.mxu0 0.0
    %1391 = vmatpush2.msra.mxu0 0.0
    %1392 = vmatprep.subr.mxu0 0.0
    %1393 = vmatpush2.msra.mxu0 0.0
    %1394 = vmatprep.subr.mxu0 0.0
    %1395 = vmatpush2.msra.mxu0 0.0
    %1396 = vmatprep.subr.mxu0 0.0
    %1397 = vmatpush2.msra.mxu0 0.0
    %1398 = vmatprep.subr.mxu0 0.0
    %1399 = vmatpush2.msra.mxu0 0.0
    %1400 = vmatprep.subr.mxu0 0.0
    %1401 = vmatpush2.msra.mxu0 0.0
    %1402 = vmatprep.subr.mxu0 0.0
    %1403 = vmatpush2.msra.mxu0 0.0
    %1404 = vmatprep.mubr.f32.mxu0 0.0
    %v1405 = vand.u32 %v1176, 4294901760
    %v1406 = vsub.f32 %v1176, %v1405
    %1407 = vmatmul.mubr.f32.gmra.mxu0 %v1406
    %v1408 = vpop.f32.mrf.mxu0
    %v1409 = vadd.f32 %v1333, %v1408
    %v1410 = vpop.f32.mrf.mxu0
    %1411 = vdwg.mxu0
    %1412 = vmatprep.subr.mxu0 0.0
    %1413 = vmatpush1.msra.mxu0 0.0
    %1414 = vmatprep.subr.mxu0 0.0
    %1415 = vmatpush1.msra.mxu0 0.0
    %1416 = vmatprep.subr.mxu0 0.0
    %1417 = vmatpush1.msra.mxu0 0.0
    %1418 = vmatprep.subr.mxu0 0.0
    %1419 = vmatpush1.msra.mxu0 0.0
    %1420 = vmatprep.subr.mxu0 0.0
    %1421 = vmatpush1.msra.mxu0 0.0
    %1422 = vmatprep.subr.mxu0 0.0
    %1423 = vmatpush1.msra.mxu0 0.0
    %1424 = vmatprep.subr.mxu0 0.0
    %1425 = vmatpush1.msra.mxu0 0.0
    %1426 = vmatprep.subr.mxu0 0.0
    %1427 = vmatpush1.msra.mxu0 0.0
    %1428 = vmatprep.subr.mxu0 0.0
    %1429 = vmatpush1.msra.mxu0 0.0
    %1430 = vmatprep.subr.mxu0 0.0
    %1431 = vmatpush1.msra.mxu0 0.0
    %1432 = vmatprep.subr.mxu0 0.0
    %1433 = vmatpush1.msra.mxu0 0.0
    %1434 = vmatprep.subr.mxu0 0.0
    %1435 = vmatpush1.msra.mxu0 0.0
    %1436 = vmatprep.subr.mxu0 0.0
    %1437 = vmatpush1.msra.mxu0 0.0
    %1438 = vmatprep.subr.mxu0 0.0
    %1439 = vmatpush1.msra.mxu0 0.0
    %1440 = vmatprep.subr.mxu0 0.0
    %v1441 = vand.u32 %v711, 4294901760
    %1442 = vmatpush1.msra.mxu0 %v1441
    %1443 = vmatprep.subr.mxu0 0.0
    %v1444 = vand.u32 %v710, 4294901760
    %1445 = vmatpush1.msra.mxu0 %v1444
    %1446 = vmatprep.subr.mxu0 0.0
    %1447 = vmatpush2.msra.mxu0 0.0
    %1448 = vmatprep.subr.mxu0 0.0
    %1449 = vmatpush2.msra.mxu0 0.0
    %1450 = vmatprep.subr.mxu0 0.0
    %1451 = vmatpush2.msra.mxu0 0.0
    %1452 = vmatprep.subr.mxu0 0.0
    %1453 = vmatpush2.msra.mxu0 0.0
    %1454 = vmatprep.subr.mxu0 0.0
    %1455 = vmatpush2.msra.mxu0 0.0
    %1456 = vmatprep.subr.mxu0 0.0
    %1457 = vmatpush2.msra.mxu0 0.0
    %1458 = vmatprep.subr.mxu0 0.0
    %1459 = vmatpush2.msra.mxu0 0.0
    %1460 = vmatprep.subr.mxu0 0.0
    %1461 = vmatpush2.msra.mxu0 0.0
    %1462 = vmatprep.subr.mxu0 0.0
    %1463 = vmatpush2.msra.mxu0 0.0
    %1464 = vmatprep.subr.mxu0 0.0
    %1465 = vmatpush2.msra.mxu0 0.0
    %1466 = vmatprep.subr.mxu0 0.0
    %1467 = vmatpush2.msra.mxu0 0.0
    %1468 = vmatprep.subr.mxu0 0.0
    %1469 = vmatpush2.msra.mxu0 0.0
    %1470 = vmatprep.subr.mxu0 0.0
    %1471 = vmatpush2.msra.mxu0 0.0
    %1472 = vmatprep.subr.mxu0 0.0
    %1473 = vmatpush2.msra.mxu0 0.0
    %1474 = vmatprep.subr.mxu0 0.0
    %1475 = vmatpush2.msra.mxu0 0.0
    %1476 = vmatprep.subr.mxu0 0.0
    %1477 = vmatpush2.msra.mxu0 0.0
    %1478 = vmatprep.mubr.f32.mxu0 0.0
    %v1479 = vand.u32 %v1176, 4294901760
    %v1480 = vsub.f32 %v1176, %v1479
    %v1481 = vand.u32 %v1480, 4294901760
    %1482 = vmatmul.mubr.f32.gmra.mxu0 %v1481
    %v1483 = vpop.f32.mrf.mxu0
    %v1484 = vadd.f32 %v1409, %v1483
    %v1485 = vpop.f32.mrf.mxu0
    %1486 = vdwg.mxu0
    %1487 = vmatprep.subr.mxu0 0.0
    %1488 = vmatpush1.msra.mxu0 0.0
    %1489 = vmatprep.subr.mxu0 0.0
    %1490 = vmatpush1.msra.mxu0 0.0
    %1491 = vmatprep.subr.mxu0 0.0
    %1492 = vmatpush1.msra.mxu0 0.0
    %1493 = vmatprep.subr.mxu0 0.0
    %1494 = vmatpush1.msra.mxu0 0.0
    %1495 = vmatprep.subr.mxu0 0.0
    %1496 = vmatpush1.msra.mxu0 0.0
    %1497 = vmatprep.subr.mxu0 0.0
    %1498 = vmatpush1.msra.mxu0 0.0
    %1499 = vmatprep.subr.mxu0 0.0
    %1500 = vmatpush1.msra.mxu0 0.0
    %1501 = vmatprep.subr.mxu0 0.0
    %1502 = vmatpush1.msra.mxu0 0.0
    %1503 = vmatprep.subr.mxu0 0.0
    %1504 = vmatpush1.msra.mxu0 0.0
    %1505 = vmatprep.subr.mxu0 0.0
    %1506 = vmatpush1.msra.mxu0 0.0
    %1507 = vmatprep.subr.mxu0 0.0
    %1508 = vmatpush1.msra.mxu0 0.0
    %1509 = vmatprep.subr.mxu0 0.0
    %1510 = vmatpush1.msra.mxu0 0.0
    %1511 = vmatprep.subr.mxu0 0.0
    %1512 = vmatpush1.msra.mxu0 0.0
    %1513 = vmatprep.subr.mxu0 0.0
    %1514 = vmatpush1.msra.mxu0 0.0
    %1515 = vmatprep.subr.mxu0 0.0
    %v1516 = vand.u32 %v711, 4294901760
    %v1517 = vsub.f32 %v711, %v1516
    %v1518 = vand.u32 %v1517, 4294901760
    %1519 = vmatpush1.msra.mxu0 %v1518
    %1520 = vmatprep.subr.mxu0 0.0
    %v1521 = vand.u32 %v710, 4294901760
    %v1522 = vsub.f32 %v710, %v1521
    %v1523 = vand.u32 %v1522, 4294901760
    %1524 = vmatpush1.msra.mxu0 %v1523
    %1525 = vmatprep.subr.mxu0 0.0
    %1526 = vmatpush2.msra.mxu0 0.0
    %1527 = vmatprep.subr.mxu0 0.0
    %1528 = vmatpush2.msra.mxu0 0.0
    %1529 = vmatprep.subr.mxu0 0.0
    %1530 = vmatpush2.msra.mxu0 0.0
    %1531 = vmatprep.subr.mxu0 0.0
    %1532 = vmatpush2.msra.mxu0 0.0
    %1533 = vmatprep.subr.mxu0 0.0
    %1534 = vmatpush2.msra.mxu0 0.0
    %1535 = vmatprep.subr.mxu0 0.0
    %1536 = vmatpush2.msra.mxu0 0.0
    %1537 = vmatprep.subr.mxu0 0.0
    %1538 = vmatpush2.msra.mxu0 0.0
    %1539 = vmatprep.subr.mxu0 0.0
    %1540 = vmatpush2.msra.mxu0 0.0
    %1541 = vmatprep.subr.mxu0 0.0
    %1542 = vmatpush2.msra.mxu0 0.0
    %1543 = vmatprep.subr.mxu0 0.0
    %1544 = vmatpush2.msra.mxu0 0.0
    %1545 = vmatprep.subr.mxu0 0.0
    %1546 = vmatpush2.msra.mxu0 0.0
    %1547 = vmatprep.subr.mxu0 0.0
    %1548 = vmatpush2.msra.mxu0 0.0
    %1549 = vmatprep.subr.mxu0 0.0
    %1550 = vmatpush2.msra.mxu0 0.0
    %1551 = vmatprep.subr.mxu0 0.0
    %1552 = vmatpush2.msra.mxu0 0.0
    %1553 = vmatprep.subr.mxu0 0.0
    %1554 = vmatpush2.msra.mxu0 0.0
    %1555 = vmatprep.subr.mxu0 0.0
    %1556 = vmatpush2.msra.mxu0 0.0
    %1557 = vmatprep.mubr.f32.mxu0 0.0
    %v1558 = vand.u32 %v1176, 4294901760
    %1559 = vmatmul.mubr.f32.gmra.mxu0 %v1558
    %v1560 = vpop.f32.mrf.mxu0
    %v1561 = vadd.f32 %v1484, %v1560
    %v1562 = vpop.f32.mrf.mxu0
    %1563 = vdwg.mxu0
    %1564 = vmatprep.subr.mxu0 0.0
    %1565 = vmatpush1.msra.mxu0 0.0
    %1566 = vmatprep.subr.mxu0 0.0
    %1567 = vmatpush1.msra.mxu0 0.0
    %1568 = vmatprep.subr.mxu0 0.0
    %1569 = vmatpush1.msra.mxu0 0.0
    %1570 = vmatprep.subr.mxu0 0.0
    %1571 = vmatpush1.msra.mxu0 0.0
    %1572 = vmatprep.subr.mxu0 0.0
    %1573 = vmatpush1.msra.mxu0 0.0
    %1574 = vmatprep.subr.mxu0 0.0
    %1575 = vmatpush1.msra.mxu0 0.0
    %1576 = vmatprep.subr.mxu0 0.0
    %1577 = vmatpush1.msra.mxu0 0.0
    %1578 = vmatprep.subr.mxu0 0.0
    %1579 = vmatpush1.msra.mxu0 0.0
    %1580 = vmatprep.subr.mxu0 0.0
    %1581 = vmatpush1.msra.mxu0 0.0
    %1582 = vmatprep.subr.mxu0 0.0
    %1583 = vmatpush1.msra.mxu0 0.0
    %1584 = vmatprep.subr.mxu0 0.0
    %1585 = vmatpush1.msra.mxu0 0.0
    %1586 = vmatprep.subr.mxu0 0.0
    %1587 = vmatpush1.msra.mxu0 0.0
    %1588 = vmatprep.subr.mxu0 0.0
    %1589 = vmatpush1.msra.mxu0 0.0
    %1590 = vmatprep.subr.mxu0 0.0
    %1591 = vmatpush1.msra.mxu0 0.0
    %1592 = vmatprep.subr.mxu0 0.0
    %v1593 = vand.u32 %v711, 4294901760
    %1594 = vmatpush1.msra.mxu0 %v1593
    %1595 = vmatprep.subr.mxu0 0.0
    %v1596 = vand.u32 %v710, 4294901760
    %1597 = vmatpush1.msra.mxu0 %v1596
    %1598 = vmatprep.subr.mxu0 0.0
    %1599 = vmatpush2.msra.mxu0 0.0
    %1600 = vmatprep.subr.mxu0 0.0
    %1601 = vmatpush2.msra.mxu0 0.0
    %1602 = vmatprep.subr.mxu0 0.0
    %1603 = vmatpush2.msra.mxu0 0.0
    %1604 = vmatprep.subr.mxu0 0.0
    %1605 = vmatpush2.msra.mxu0 0.0
    %1606 = vmatprep.subr.mxu0 0.0
    %1607 = vmatpush2.msra.mxu0 0.0
    %1608 = vmatprep.subr.mxu0 0.0
    %1609 = vmatpush2.msra.mxu0 0.0
    %1610 = vmatprep.subr.mxu0 0.0
    %1611 = vmatpush2.msra.mxu0 0.0
    %1612 = vmatprep.subr.mxu0 0.0
    %1613 = vmatpush2.msra.mxu0 0.0
    %1614 = vmatprep.subr.mxu0 0.0
    %1615 = vmatpush2.msra.mxu0 0.0
    %1616 = vmatprep.subr.mxu0 0.0
    %1617 = vmatpush2.msra.mxu0 0.0
    %1618 = vmatprep.subr.mxu0 0.0
    %1619 = vmatpush2.msra.mxu0 0.0
    %1620 = vmatprep.subr.mxu0 0.0
    %1621 = vmatpush2.msra.mxu0 0.0
    %1622 = vmatprep.subr.mxu0 0.0
    %1623 = vmatpush2.msra.mxu0 0.0
    %1624 = vmatprep.subr.mxu0 0.0
    %1625 = vmatpush2.msra.mxu0 0.0
    %1626 = vmatprep.subr.mxu0 0.0
    %1627 = vmatpush2.msra.mxu0 0.0
    %1628 = vmatprep.subr.mxu0 0.0
    %1629 = vmatpush2.msra.mxu0 0.0
    %1630 = vmatprep.mubr.f32.mxu0 0.0
    %v1631 = vand.u32 %v1176, 4294901760
    %1632 = vmatmul.mubr.f32.gmra.mxu0 %v1631
    %v1633 = vpop.f32.mrf.mxu0
    %v1634 = vadd.f32 %v1561, %v1633
    %v1635 = vpop.f32.mrf.mxu0
    %1636 = vdwg.mxu0
    %v1637 = vrcp.pop %v1634
    %v1638 = vmul.f32 %v1172, %v1637
    %vm1639 = vcmask 27648
    %1640 = vst.msk [vmem:[#allocation2] sm:$0xf] %vm1639, %v1638
    // Predicated region
    $region18: #{tpu_custom_call.1} parent=1 // pred_check
      _
    $region19: #{tpu_custom_call.1} parent=1 // pred_check_branch
      %1642 = sbr.rel (0) target = $region21
    $region20: #{tpu_custom_call.1} parent=1 // pred_region
      %s1644 = ssub.s32 64, 64
      %1645 = vsyncadd [#allocation3], %s1644
      %s1647 = sshll.u32 [#allocation2], 4
      %s1648 = int_to_ptr.vmem [resolvable:$true] %s1647
      %1650 = dma.vmem_to_hbm [thread:$0]  %s1648, 64, %s4, [#allocation3]
    $region21: #{tpu_custom_call.1} parent=1 // pred_fallthru
      _
    // Predicated region
    $region22: #{tpu_custom_call.1} parent=1 // pred_check
      _
    $region23: #{tpu_custom_call.1} parent=1 // pred_check_branch
      %1652 = sbr.rel (0) target = $region25
    $region24: #{tpu_custom_call.1} parent=1 // pred_region
      %1653 = dma.done [#allocation3], 64
    $region25: #{tpu_custom_call.1} parent=1 // pred_fallthru
      _
    %1654 = vsyncpa [#allocation3], 1

</llo_original>
